<compile_context>
chip_gen: v6e
topology: v6e:2x2x1
jax: 0.10.0
libtpu: 0.0.40
codegen_flags: <defaults>
</compile_context>

<pallas_src>
import functools

import jax
import jax.numpy as jnp
from jax import lax
from jax.experimental import pallas as pl
from jax.experimental.pallas import tpu as pltpu


LANE = 128


def _round_up(x, m):
    return (x + m - 1) // m * m


def _pick_batch_tile(batch):
    """Largest multiple-of-8 divisor of batch (capped), else the full batch."""
    if batch % 8 != 0:
        return batch
    for cand in (128, 64, 32, 16, 8):
        if batch % cand == 0:
            return cand
    return batch


def _rnn_fc_kernel(n_layers, seq, batch_tile, hidden_pad, out_pad, *refs):
    """refs layout:
      refs[0]                 : x_ref      (seq, batch_tile, in_pad)
      refs[1 + 3*l + 0]       : w_ih_T[l]  (in_l_pad, hidden_pad)
      refs[1 + 3*l + 1]       : w_hh_T[l]  (hidden_pad, hidden_pad)
      refs[1 + 3*l + 2]       : bias[l]    (1, hidden_pad)   (= b_ih + b_hh, padded)
      refs[1 + 3*n_layers]    : fc_w_T     (hidden_pad, out_pad)
      refs[2 + 3*n_layers]    : fc_b       (1, out_pad)
      refs[n_in + 0]          : out_ref    (seq, batch_tile, out_pad)
      refs[n_in + 1]          : hid_ref    (n_layers, batch_tile, hidden_pad)
      refs[n_in + 2]          : buf_ref    scratch (seq, batch_tile, hidden_pad)
    """
    n_in = 1 + 3 * n_layers + 2
    x_ref = refs[0]
    fc_w_t_ref = refs[1 + 3 * n_layers]
    fc_b_ref = refs[2 + 3 * n_layers]
    out_ref = refs[n_in + 0]
    hid_ref = refs[n_in + 1]
    buf_ref = refs[n_in + 2]

    rows = seq * batch_tile

    for l in range(n_layers):
        w_ih_t = refs[1 + 3 * l][...]          # (in_l_pad, Hp)
        w_hh_t = refs[2 + 3 * l][...]          # (Hp, Hp)
        bias = refs[3 + 3 * l][...]            # (1, Hp)

        # Batched (all-timestep) input projection: one big MXU matmul per layer.
        src = x_ref[...] if l == 0 else buf_ref[...]
        src2d = src.reshape(rows, src.shape[-1])
        pre = jnp.dot(src2d, w_ih_t, preferred_element_type=jnp.float32) + bias
        buf_ref[...] = pre.reshape(seq, batch_tile, hidden_pad)

        # Serial recurrence: only h @ W_hh^T + tanh per timestep.
        # h is carried by value; buf_ref[t] is overwritten in place with the
        # activation so the next layer / final FC read it directly.
        def step(t, h, w_hh_t=w_hh_t):
            h_new = jnp.tanh(
                buf_ref[t]
                + jnp.dot(h, w_hh_t, preferred_element_type=jnp.float32)
            )
            buf_ref[t] = h_new
            return h_new

        h0 = jnp.zeros((batch_tile, hidden_pad), jnp.float32)
        h_last = lax.fori_loop(0, seq, step, h0, unroll=(seq <= 32))
        hid_ref[l, :, :] = h_last

    # Final Linear on the flattened activations: single matmul + one lane-dense store.
    y = (
        jnp.dot(
            buf_ref[...].reshape(rows, hidden_pad),
            fc_w_t_ref[...],
            preferred_element_type=jnp.float32,
        )
        + fc_b_ref[...]
    )
    out_ref[...] = y.reshape(seq, batch_tile, out_pad)


def prepare_params(params, *, input_size, hidden_dim, output_size, n_layers):
    """One-time prep: transpose, pre-sum biases, zero-pad to 128-lane widths."""
    hp = _round_up(hidden_dim, LANE)
    op = _round_up(output_size, LANE)
    ip = _round_up(input_size, LANE)

    args = []
    for l in range(n_layers):
        w_ih, w_hh, b_ih, b_hh = params[f"layer_{l}"]
        in_l = input_size if l == 0 else hidden_dim
        in_l_pad = ip if l == 0 else hp
        w_ih_t = (
            jnp.zeros((in_l_pad, hp), jnp.float32)
            .at[:in_l, :hidden_dim].set(w_ih.T.astype(jnp.float32))
        )
        w_hh_t = (
            jnp.zeros((hp, hp), jnp.float32)
            .at[:hidden_dim, :hidden_dim].set(w_hh.T.astype(jnp.float32))
        )
        bias = (
            jnp.zeros((1, hp), jnp.float32)
            .at[0, :hidden_dim].set((b_ih + b_hh).astype(jnp.float32))
        )
        args += [w_ih_t, w_hh_t, bias]

    fc_w, fc_b = params["fc"]
    fc_w_t = (
        jnp.zeros((hp, op), jnp.float32)
        .at[:hidden_dim, :output_size].set(fc_w.T.astype(jnp.float32))
    )
    fc_b_p = jnp.zeros((1, op), jnp.float32).at[0, :output_size].set(
        fc_b.astype(jnp.float32)
    )
    args += [fc_w_t, fc_b_p]

    dims = dict(hp=hp, op=op, ip=ip)
    return tuple(jax.device_put(a) for a in args), dims


def rnn_model_forward(x, prepped, *, n_layers, hidden_dim, output_size):
    """x: (batch, seq, input_size) f32. Returns ((batch*seq, out), (layers, batch, H))."""
    weight_args, dims = prepped
    hp, op, ip = dims["hp"], dims["op"], dims["ip"]
    batch, seq, input_size = x.shape

    batch_tile = _pick_batch_tile(batch)
    nb = batch // batch_tile

    # Time-major layout so each timestep is a leading-dim slice inside the
    # kernel; zero-pad the feature width to a lane multiple (single fused op).
    x_p = (
        jnp.zeros((seq, batch, ip), jnp.float32)
        .at[:, :, :input_size].set(jnp.transpose(x, (1, 0, 2)).astype(jnp.float32))
    )

    kernel = functools.partial(_rnn_fc_kernel, n_layers, seq, batch_tile, hp, op)

    in_specs = [pl.BlockSpec((seq, batch_tile, ip), lambda b: (0, b, 0))]
    for a in weight_args:
        in_specs.append(
            pl.BlockSpec(a.shape, lambda b, nd=len(a.shape): (0,) * nd)
        )

    out_specs = (
        pl.BlockSpec((seq, batch_tile, op), lambda b: (0, b, 0)),
        pl.BlockSpec((n_layers, batch_tile, hp), lambda b: (0, b, 0)),
    )

    # Advisory cost estimate for XLA's scheduler.
    rows = batch * seq
    flops = 0
    in_l = ip
    for _ in range(n_layers):
        flops += 2 * rows * in_l * hp      # batched input projection
        flops += 2 * rows * hp * hp        # recurrent matmuls across all timesteps
        in_l = hp
    flops += 2 * rows * hp * op            # final Linear
    transcendentals = n_layers * rows * hp
    bytes_accessed = 4 * (
        int(x_p.size)
        + sum(int(a.size) for a in weight_args)
        + rows * op
        + n_layers * batch * hp
    )
    cost = pl.CostEstimate(
        flops=flops, transcendentals=transcendentals, bytes_accessed=bytes_accessed
    )

    out_p, hid_p = pl.pallas_call(
        kernel,
        out_shape=(
            jax.ShapeDtypeStruct((seq, batch, op), jnp.float32),
            jax.ShapeDtypeStruct((n_layers, batch, hp), jnp.float32),
        ),
        grid_spec=pltpu.PrefetchScalarGridSpec(
            num_scalar_prefetch=0,
            grid=(nb,),
            in_specs=in_specs,
            out_specs=out_specs,
            scratch_shapes=[
                pltpu.VMEM((seq, batch_tile, hp), jnp.float32),  # pre-act / activations
            ],
        ),
        compiler_params=pltpu.CompilerParams(dimension_semantics=("parallel",)),
        cost_estimate=cost,
    )(x_p, *weight_args)

    # Match torch: out.contiguous().view(-1, hidden_dim) -> fc -> (batch*seq, out)
    out = jnp.transpose(out_p, (1, 0, 2)).reshape(batch * seq, op)[:, :output_size]
    hidden = hid_p[:, :, :hidden_dim]
    return out, hidden


def _reference_forward(x, params, *, n_layers, hidden_dim, output_size):
    """Pure-JAX reference mirroring torch semantics, for validation."""
    batch, seq, _ = x.shape
    prev = x
    hiddens = []
    for l in range(n_layers):
        w_ih, w_hh, b_ih, b_hh = params[f"layer_{l}"]
        h = jnp.zeros((batch, hidden_dim), jnp.float32)
        outs = []
        for t in range(seq):
            h = jnp.tanh(prev[:, t, :] @ w_ih.T + b_ih + h @ w_hh.T + b_hh)
            outs.append(h)
        hiddens.append(h)
        prev = jnp.stack(outs, axis=1)
    fc_w, fc_b = params["fc"]
    out = prev.reshape(batch * seq, hidden_dim) @ fc_w.T + fc_b
    return out, jnp.stack(hiddens, axis=0)


def init_params(key, input_size, hidden_dim, output_size, n_layers):
    """Deterministic init (uniform(-1/sqrt(H), 1/sqrt(H)), like torch defaults)."""
    bound = 1.0 / jnp.sqrt(jnp.float32(hidden_dim))
    params = {}
    for l in range(n_layers):
        in_l = input_size if l == 0 else hidden_dim
        key, k1, k2, k3, k4 = jax.random.split(key, 5)
        params[f"layer_{l}"] = (
            jax.random.uniform(k1, (hidden_dim, in_l), jnp.float32, -bound, bound),
            jax.random.uniform(k2, (hidden_dim, hidden_dim), jnp.float32, -bound, bound),
            jax.random.uniform(k3, (hidden_dim,), jnp.float32, -bound, bound),
            jax.random.uniform(k4, (hidden_dim,), jnp.float32, -bound, bound),
        )
    key, k1, k2 = jax.random.split(key, 3)
    params["fc"] = (
        jax.random.uniform(k1, (output_size, hidden_dim), jnp.float32, -bound, bound),
        jax.random.uniform(k2, (output_size,), jnp.float32, -bound, bound),
    )
    return params


if __name__ == "__main__":
    batch, seq = 2, 8
    input_size, hidden_dim, output_size, n_layers = 16, 32, 8, 2

    key = jax.random.PRNGKey(0)
    key, kx = jax.random.split(key)
    x = jax.random.normal(kx, (batch, seq, input_size), jnp.float32)
    params = init_params(key, input_size, hidden_dim, output_size, n_layers)

    prepped = prepare_params(
        params,
        input_size=input_size,
        hidden_dim=hidden_dim,
        output_size=output_size,
        n_layers=n_layers,
    )

    out, hidden = rnn_model_forward(
        x, prepped, n_layers=n_layers, hidden_dim=hidden_dim, output_size=output_size
    )
    out = jax.block_until_ready(out)
    hidden = jax.block_until_ready(hidden)

    ref_out, ref_hidden = _reference_forward(
        x, params, n_layers=n_layers, hidden_dim=hidden_dim, output_size=output_size
    )
    assert out.shape == (batch * seq, output_size)
    assert hidden.shape == (n_layers, batch, hidden_dim)
    assert jnp.allclose(out, ref_out, atol=1e-4, rtol=1e-4)
    assert jnp.allclose(hidden, ref_hidden, atol=1e-4, rtol=1e-4)

    print("KERNEL_OK")
</pallas_src>

<mosaic_0001>
module attributes {stable_mosaic.version = 11 : i64} {
  func.func @_rnn_fc_kernel(%arg0: i32, %arg1: memref<8x2x128xf32, #tpu.memory_space<vmem>>, %arg2: memref<128x128xf32, #tpu.memory_space<vmem>>, %arg3: memref<128x128xf32, #tpu.memory_space<vmem>>, %arg4: memref<1x128xf32, #tpu.memory_space<vmem>>, %arg5: memref<128x128xf32, #tpu.memory_space<vmem>>, %arg6: memref<128x128xf32, #tpu.memory_space<vmem>>, %arg7: memref<1x128xf32, #tpu.memory_space<vmem>>, %arg8: memref<128x128xf32, #tpu.memory_space<vmem>>, %arg9: memref<1x128xf32, #tpu.memory_space<vmem>>, %arg10: memref<8x2x128xf32, #tpu.memory_space<vmem>>, %arg11: memref<2x2x128xf32, #tpu.memory_space<vmem>>, %arg12: memref<8x2x128xf32, #tpu.memory_space<vmem>>) attributes {dimension_semantics = [#tpu.dimension_semantics<parallel>], iteration_bounds = array<i64: 1>, scalar_prefetch = 0 : i64, scratch_operands = 1 : i64, tpu.core_type = #tpu.core_type<tc>, window_params = [{transform_indices = @transform_0, window_bounds = array<i64: 8, 2, 128>}, {pipeline_mode = #tpu.pipeline_mode<synchronous>, transform_indices = @transform_1, window_bounds = array<i64: 128, 128>}, {pipeline_mode = #tpu.pipeline_mode<synchronous>, transform_indices = @transform_2, window_bounds = array<i64: 128, 128>}, {pipeline_mode = #tpu.pipeline_mode<synchronous>, transform_indices = @transform_3, window_bounds = array<i64: 1, 128>}, {pipeline_mode = #tpu.pipeline_mode<synchronous>, transform_indices = @transform_4, window_bounds = array<i64: 128, 128>}, {pipeline_mode = #tpu.pipeline_mode<synchronous>, transform_indices = @transform_5, window_bounds = array<i64: 128, 128>}, {pipeline_mode = #tpu.pipeline_mode<synchronous>, transform_indices = @transform_6, window_bounds = array<i64: 1, 128>}, {pipeline_mode = #tpu.pipeline_mode<synchronous>, transform_indices = @transform_7, window_bounds = array<i64: 128, 128>}, {pipeline_mode = #tpu.pipeline_mode<synchronous>, transform_indices = @transform_8, window_bounds = array<i64: 1, 128>}, {transform_indices = @transform_9, window_bounds = array<i64: 8, 2, 128>}, {transform_indices = @transform_10, window_bounds = array<i64: 2, 2, 128>}]} {
    %c0 = arith.constant 0 : index
    %c0_0 = arith.constant 0 : index
    %0 = vector.load %arg2[%c0, %c0_0] : memref<128x128xf32, #tpu.memory_space<vmem>>, vector<128x128xf32>
    %c0_1 = arith.constant 0 : index
    %c0_2 = arith.constant 0 : index
    %1 = vector.load %arg3[%c0_1, %c0_2] : memref<128x128xf32, #tpu.memory_space<vmem>>, vector<128x128xf32>
    %c0_3 = arith.constant 0 : index
    %c0_4 = arith.constant 0 : index
    %2 = vector.load %arg4[%c0_3, %c0_4] : memref<1x128xf32, #tpu.memory_space<vmem>>, vector<1x128xf32>
    %c0_5 = arith.constant 0 : index
    %c0_6 = arith.constant 0 : index
    %c0_7 = arith.constant 0 : index
    %3 = vector.load %arg1[%c0_5, %c0_6, %c0_7] : memref<8x2x128xf32, #tpu.memory_space<vmem>>, vector<8x2x128xf32>
    %4 = vector.shape_cast %3 : vector<8x2x128xf32> to vector<16x128xf32>
    %cst = arith.constant dense<0.000000e+00> : vector<16x128xf32>
    %5 = tpu.matmul %4, %0, %cst {dimension_numbers = #tpu.dot_dimension_numbers<[1], [0], [0], [1], [0, 0, 1, 1], [], []>} : vector<16x128xf32>, vector<128x128xf32>, vector<16x128xf32> -> vector<16x128xf32>
    %6 = vector.broadcast %2 : vector<1x128xf32> to vector<16x128xf32>
    %7 = arith.addf %5, %6 : vector<16x128xf32>
    %8 = vector.shape_cast %7 : vector<16x128xf32> to vector<8x2x128xf32>
    %c0_8 = arith.constant 0 : index
    %c0_9 = arith.constant 0 : index
    %c0_10 = arith.constant 0 : index
    %9 = vector.load %arg12[%c0_8, %c0_9, %c0_10] : memref<8x2x128xf32, #tpu.memory_space<vmem>>, vector<8x2x128xf32>
    tpu.vector_store %arg12[%c0_8, %c0_9, %c0_10], %8 {strides = array<i32>} : memref<8x2x128xf32, #tpu.memory_space<vmem>>, vector<8x2x128xf32>,
    %cst_11 = arith.constant 0.000000e+00 : f32
    %10 = vector.broadcast %cst_11 : f32 to vector<2x128xf32>
    %c0_i32 = arith.constant 0 : i32
    %11 = arith.index_cast %c0_i32 : i32 to index
    %c0_12 = arith.constant 0 : index
    %c0_13 = arith.constant 0 : index
    %12 = vector.load %arg12[%11, %c0_12, %c0_13] : memref<8x2x128xf32, #tpu.memory_space<vmem>>, vector<1x2x128xf32>
    %13 = vector.shape_cast %12 : vector<1x2x128xf32> to vector<2x128xf32>
    %cst_14 = arith.constant dense<0.000000e+00> : vector<2x128xf32>
    %14 = tpu.matmul %10, %1, %cst_14 {dimension_numbers = #tpu.dot_dimension_numbers<[1], [0], [0], [1], [0, 0, 1, 1], [], []>} : vector<2x128xf32>, vector<128x128xf32>, vector<2x128xf32> -> vector<2x128xf32>
    %15 = arith.addf %13, %14 : vector<2x128xf32>
    %16 = math.tanh %15 : vector<2x128xf32>
    %17 = arith.index_cast %c0_i32 : i32 to index
    %c0_15 = arith.constant 0 : index
    %c0_16 = arith.constant 0 : index
    %18 = vector.load %arg12[%17, %c0_15, %c0_16] : memref<8x2x128xf32, #tpu.memory_space<vmem>>, vector<1x2x128xf32>
    %19 = vector.shape_cast %18 : vector<1x2x128xf32> to vector<2x128xf32>
    %20 = vector.shape_cast %16 : vector<2x128xf32> to vector<1x2x128xf32>
    tpu.vector_store %arg12[%17, %c0_15, %c0_16], %20 {strides = array<i32>} : memref<8x2x128xf32, #tpu.memory_space<vmem>>, vector<1x2x128xf32>,
    %c1_i32 = arith.constant 1 : i32
    %21 = arith.index_cast %c1_i32 : i32 to index
    %c0_17 = arith.constant 0 : index
    %c0_18 = arith.constant 0 : index
    %22 = vector.load %arg12[%21, %c0_17, %c0_18] : memref<8x2x128xf32, #tpu.memory_space<vmem>>, vector<1x2x128xf32>
    %23 = vector.shape_cast %22 : vector<1x2x128xf32> to vector<2x128xf32>
    %cst_19 = arith.constant dense<0.000000e+00> : vector<2x128xf32>
    %24 = tpu.matmul %16, %1, %cst_19 {dimension_numbers = #tpu.dot_dimension_numbers<[1], [0], [0], [1], [0, 0, 1, 1], [], []>} : vector<2x128xf32>, vector<128x128xf32>, vector<2x128xf32> -> vector<2x128xf32>
    %25 = arith.addf %23, %24 : vector<2x128xf32>
    %26 = math.tanh %25 : vector<2x128xf32>
    %27 = arith.index_cast %c1_i32 : i32 to index
    %c0_20 = arith.constant 0 : index
    %c0_21 = arith.constant 0 : index
    %28 = vector.load %arg12[%27, %c0_20, %c0_21] : memref<8x2x128xf32, #tpu.memory_space<vmem>>, vector<1x2x128xf32>
    %29 = vector.shape_cast %28 : vector<1x2x128xf32> to vector<2x128xf32>
    %30 = vector.shape_cast %26 : vector<2x128xf32> to vector<1x2x128xf32>
    tpu.vector_store %arg12[%27, %c0_20, %c0_21], %30 {strides = array<i32>} : memref<8x2x128xf32, #tpu.memory_space<vmem>>, vector<1x2x128xf32>,
    %c2_i32 = arith.constant 2 : i32
    %31 = arith.index_cast %c2_i32 : i32 to index
    %c0_22 = arith.constant 0 : index
    %c0_23 = arith.constant 0 : index
    %32 = vector.load %arg12[%31, %c0_22, %c0_23] : memref<8x2x128xf32, #tpu.memory_space<vmem>>, vector<1x2x128xf32>
    %33 = vector.shape_cast %32 : vector<1x2x128xf32> to vector<2x128xf32>
    %cst_24 = arith.constant dense<0.000000e+00> : vector<2x128xf32>
    %34 = tpu.matmul %26, %1, %cst_24 {dimension_numbers = #tpu.dot_dimension_numbers<[1], [0], [0], [1], [0, 0, 1, 1], [], []>} : vector<2x128xf32>, vector<128x128xf32>, vector<2x128xf32> -> vector<2x128xf32>
    %35 = arith.addf %33, %34 : vector<2x128xf32>
    %36 = math.tanh %35 : vector<2x128xf32>
    %37 = arith.index_cast %c2_i32 : i32 to index
    %c0_25 = arith.constant 0 : index
    %c0_26 = arith.constant 0 : index
    %38 = vector.load %arg12[%37, %c0_25, %c0_26] : memref<8x2x128xf32, #tpu.memory_space<vmem>>, vector<1x2x128xf32>
    %39 = vector.shape_cast %38 : vector<1x2x128xf32> to vector<2x128xf32>
    %40 = vector.shape_cast %36 : vector<2x128xf32> to vector<1x2x128xf32>
    tpu.vector_store %arg12[%37, %c0_25, %c0_26], %40 {strides = array<i32>} : memref<8x2x128xf32, #tpu.memory_space<vmem>>, vector<1x2x128xf32>,
    %c3_i32 = arith.constant 3 : i32
    %41 = arith.index_cast %c3_i32 : i32 to index
    %c0_27 = arith.constant 0 : index
    %c0_28 = arith.constant 0 : index
    %42 = vector.load %arg12[%41, %c0_27, %c0_28] : memref<8x2x128xf32, #tpu.memory_space<vmem>>, vector<1x2x128xf32>
    %43 = vector.shape_cast %42 : vector<1x2x128xf32> to vector<2x128xf32>
    %cst_29 = arith.constant dense<0.000000e+00> : vector<2x128xf32>
    %44 = tpu.matmul %36, %1, %cst_29 {dimension_numbers = #tpu.dot_dimension_numbers<[1], [0], [0], [1], [0, 0, 1, 1], [], []>} : vector<2x128xf32>, vector<128x128xf32>, vector<2x128xf32> -> vector<2x128xf32>
    %45 = arith.addf %43, %44 : vector<2x128xf32>
    %46 = math.tanh %45 : vector<2x128xf32>
    %47 = arith.index_cast %c3_i32 : i32 to index
    %c0_30 = arith.constant 0 : index
    %c0_31 = arith.constant 0 : index
    %48 = vector.load %arg12[%47, %c0_30, %c0_31] : memref<8x2x128xf32, #tpu.memory_space<vmem>>, vector<1x2x128xf32>
    %49 = vector.shape_cast %48 : vector<1x2x128xf32> to vector<2x128xf32>
    %50 = vector.shape_cast %46 : vector<2x128xf32> to vector<1x2x128xf32>
    tpu.vector_store %arg12[%47, %c0_30, %c0_31], %50 {strides = array<i32>} : memref<8x2x128xf32, #tpu.memory_space<vmem>>, vector<1x2x128xf32>,
    %c4_i32 = arith.constant 4 : i32
    %51 = arith.index_cast %c4_i32 : i32 to index
    %c0_32 = arith.constant 0 : index
    %c0_33 = arith.constant 0 : index
    %52 = vector.load %arg12[%51, %c0_32, %c0_33] : memref<8x2x128xf32, #tpu.memory_space<vmem>>, vector<1x2x128xf32>
    %53 = vector.shape_cast %52 : vector<1x2x128xf32> to vector<2x128xf32>
    %cst_34 = arith.constant dense<0.000000e+00> : vector<2x128xf32>
    %54 = tpu.matmul %46, %1, %cst_34 {dimension_numbers = #tpu.dot_dimension_numbers<[1], [0], [0], [1], [0, 0, 1, 1], [], []>} : vector<2x128xf32>, vector<128x128xf32>, vector<2x128xf32> -> vector<2x128xf32>
    %55 = arith.addf %53, %54 : vector<2x128xf32>
    %56 = math.tanh %55 : vector<2x128xf32>
    %57 = arith.index_cast %c4_i32 : i32 to index
    %c0_35 = arith.constant 0 : index
    %c0_36 = arith.constant 0 : index
    %58 = vector.load %arg12[%57, %c0_35, %c0_36] : memref<8x2x128xf32, #tpu.memory_space<vmem>>, vector<1x2x128xf32>
    %59 = vector.shape_cast %58 : vector<1x2x128xf32> to vector<2x128xf32>
    %60 = vector.shape_cast %56 : vector<2x128xf32> to vector<1x2x128xf32>
    tpu.vector_store %arg12[%57, %c0_35, %c0_36], %60 {strides = array<i32>} : memref<8x2x128xf32, #tpu.memory_space<vmem>>, vector<1x2x128xf32>,
    %c5_i32 = arith.constant 5 : i32
    %61 = arith.index_cast %c5_i32 : i32 to index
    %c0_37 = arith.constant 0 : index
    %c0_38 = arith.constant 0 : index
    %62 = vector.load %arg12[%61, %c0_37, %c0_38] : memref<8x2x128xf32, #tpu.memory_space<vmem>>, vector<1x2x128xf32>
    %63 = vector.shape_cast %62 : vector<1x2x128xf32> to vector<2x128xf32>
    %cst_39 = arith.constant dense<0.000000e+00> : vector<2x128xf32>
    %64 = tpu.matmul %56, %1, %cst_39 {dimension_numbers = #tpu.dot_dimension_numbers<[1], [0], [0], [1], [0, 0, 1, 1], [], []>} : vector<2x128xf32>, vector<128x128xf32>, vector<2x128xf32> -> vector<2x128xf32>
    %65 = arith.addf %63, %64 : vector<2x128xf32>
    %66 = math.tanh %65 : vector<2x128xf32>
    %67 = arith.index_cast %c5_i32 : i32 to index
    %c0_40 = arith.constant 0 : index
    %c0_41 = arith.constant 0 : index
    %68 = vector.load %arg12[%67, %c0_40, %c0_41] : memref<8x2x128xf32, #tpu.memory_space<vmem>>, vector<1x2x128xf32>
    %69 = vector.shape_cast %68 : vector<1x2x128xf32> to vector<2x128xf32>
    %70 = vector.shape_cast %66 : vector<2x128xf32> to vector<1x2x128xf32>
    tpu.vector_store %arg12[%67, %c0_40, %c0_41], %70 {strides = array<i32>} : memref<8x2x128xf32, #tpu.memory_space<vmem>>, vector<1x2x128xf32>,
    %c6_i32 = arith.constant 6 : i32
    %71 = arith.index_cast %c6_i32 : i32 to index
    %c0_42 = arith.constant 0 : index
    %c0_43 = arith.constant 0 : index
    %72 = vector.load %arg12[%71, %c0_42, %c0_43] : memref<8x2x128xf32, #tpu.memory_space<vmem>>, vector<1x2x128xf32>
    %73 = vector.shape_cast %72 : vector<1x2x128xf32> to vector<2x128xf32>
    %cst_44 = arith.constant dense<0.000000e+00> : vector<2x128xf32>
    %74 = tpu.matmul %66, %1, %cst_44 {dimension_numbers = #tpu.dot_dimension_numbers<[1], [0], [0], [1], [0, 0, 1, 1], [], []>} : vector<2x128xf32>, vector<128x128xf32>, vector<2x128xf32> -> vector<2x128xf32>
    %75 = arith.addf %73, %74 : vector<2x128xf32>
    %76 = math.tanh %75 : vector<2x128xf32>
    %77 = arith.index_cast %c6_i32 : i32 to index
    %c0_45 = arith.constant 0 : index
    %c0_46 = arith.constant 0 : index
    %78 = vector.load %arg12[%77, %c0_45, %c0_46] : memref<8x2x128xf32, #tpu.memory_space<vmem>>, vector<1x2x128xf32>
    %79 = vector.shape_cast %78 : vector<1x2x128xf32> to vector<2x128xf32>
    %80 = vector.shape_cast %76 : vector<2x128xf32> to vector<1x2x128xf32>
    tpu.vector_store %arg12[%77, %c0_45, %c0_46], %80 {strides = array<i32>} : memref<8x2x128xf32, #tpu.memory_space<vmem>>, vector<1x2x128xf32>,
    %c7_i32 = arith.constant 7 : i32
    %81 = arith.index_cast %c7_i32 : i32 to index
    %c0_47 = arith.constant 0 : index
    %c0_48 = arith.constant 0 : index
    %82 = vector.load %arg12[%81, %c0_47, %c0_48] : memref<8x2x128xf32, #tpu.memory_space<vmem>>, vector<1x2x128xf32>
    %83 = vector.shape_cast %82 : vector<1x2x128xf32> to vector<2x128xf32>
    %cst_49 = arith.constant dense<0.000000e+00> : vector<2x128xf32>
    %84 = tpu.matmul %76, %1, %cst_49 {dimension_numbers = #tpu.dot_dimension_numbers<[1], [0], [0], [1], [0, 0, 1, 1], [], []>} : vector<2x128xf32>, vector<128x128xf32>, vector<2x128xf32> -> vector<2x128xf32>
    %85 = arith.addf %83, %84 : vector<2x128xf32>
    %86 = math.tanh %85 : vector<2x128xf32>
    %87 = arith.index_cast %c7_i32 : i32 to index
    %c0_50 = arith.constant 0 : index
    %c0_51 = arith.constant 0 : index
    %88 = vector.load %arg12[%87, %c0_50, %c0_51] : memref<8x2x128xf32, #tpu.memory_space<vmem>>, vector<1x2x128xf32>
    %89 = vector.shape_cast %88 : vector<1x2x128xf32> to vector<2x128xf32>
    %90 = vector.shape_cast %86 : vector<2x128xf32> to vector<1x2x128xf32>
    tpu.vector_store %arg12[%87, %c0_50, %c0_51], %90 {strides = array<i32>} : memref<8x2x128xf32, #tpu.memory_space<vmem>>, vector<1x2x128xf32>,
    %c8_i32 = arith.constant 8 : i32
    %c0_52 = arith.constant 0 : index
    %c0_53 = arith.constant 0 : index
    %c0_54 = arith.constant 0 : index
    %91 = vector.load %arg11[%c0_52, %c0_53, %c0_54] : memref<2x2x128xf32, #tpu.memory_space<vmem>>, vector<1x2x128xf32>
    %92 = vector.shape_cast %91 : vector<1x2x128xf32> to vector<2x128xf32>
    %93 = vector.shape_cast %86 : vector<2x128xf32> to vector<1x2x128xf32>
    tpu.vector_store %arg11[%c0_52, %c0_53, %c0_54], %93 {strides = array<i32>} : memref<2x2x128xf32, #tpu.memory_space<vmem>>, vector<1x2x128xf32>,
    %c0_55 = arith.constant 0 : index
    %c0_56 = arith.constant 0 : index
    %94 = vector.load %arg5[%c0_55, %c0_56] : memref<128x128xf32, #tpu.memory_space<vmem>>, vector<128x128xf32>
    %c0_57 = arith.constant 0 : index
    %c0_58 = arith.constant 0 : index
    %95 = vector.load %arg6[%c0_57, %c0_58] : memref<128x128xf32, #tpu.memory_space<vmem>>, vector<128x128xf32>
    %c0_59 = arith.constant 0 : index
    %c0_60 = arith.constant 0 : index
    %96 = vector.load %arg7[%c0_59, %c0_60] : memref<1x128xf32, #tpu.memory_space<vmem>>, vector<1x128xf32>
    %c0_61 = arith.constant 0 : index
    %c0_62 = arith.constant 0 : index
    %c0_63 = arith.constant 0 : index
    %97 = vector.load %arg12[%c0_61, %c0_62, %c0_63] : memref<8x2x128xf32, #tpu.memory_space<vmem>>, vector<8x2x128xf32>
    %98 = vector.shape_cast %97 : vector<8x2x128xf32> to vector<16x128xf32>
    %cst_64 = arith.constant dense<0.000000e+00> : vector<16x128xf32>
    %99 = tpu.matmul %98, %94, %cst_64 {dimension_numbers = #tpu.dot_dimension_numbers<[1], [0], [0], [1], [0, 0, 1, 1], [], []>} : vector<16x128xf32>, vector<128x128xf32>, vector<16x128xf32> -> vector<16x128xf32>
    %100 = vector.broadcast %96 : vector<1x128xf32> to vector<16x128xf32>
    %101 = arith.addf %99, %100 : vector<16x128xf32>
    %102 = vector.shape_cast %101 : vector<16x128xf32> to vector<8x2x128xf32>
    %c0_65 = arith.constant 0 : index
    %c0_66 = arith.constant 0 : index
    %c0_67 = arith.constant 0 : index
    %103 = vector.load %arg12[%c0_65, %c0_66, %c0_67] : memref<8x2x128xf32, #tpu.memory_space<vmem>>, vector<8x2x128xf32>
    tpu.vector_store %arg12[%c0_65, %c0_66, %c0_67], %102 {strides = array<i32>} : memref<8x2x128xf32, #tpu.memory_space<vmem>>, vector<8x2x128xf32>,
    %cst_68 = arith.constant 0.000000e+00 : f32
    %104 = vector.broadcast %cst_68 : f32 to vector<2x128xf32>
    %c0_i32_69 = arith.constant 0 : i32
    %105 = arith.index_cast %c0_i32_69 : i32 to index
    %c0_70 = arith.constant 0 : index
    %c0_71 = arith.constant 0 : index
    %106 = vector.load %arg12[%105, %c0_70, %c0_71] : memref<8x2x128xf32, #tpu.memory_space<vmem>>, vector<1x2x128xf32>
    %107 = vector.shape_cast %106 : vector<1x2x128xf32> to vector<2x128xf32>
    %cst_72 = arith.constant dense<0.000000e+00> : vector<2x128xf32>
    %108 = tpu.matmul %104, %95, %cst_72 {dimension_numbers = #tpu.dot_dimension_numbers<[1], [0], [0], [1], [0, 0, 1, 1], [], []>} : vector<2x128xf32>, vector<128x128xf32>, vector<2x128xf32> -> vector<2x128xf32>
    %109 = arith.addf %107, %108 : vector<2x128xf32>
    %110 = math.tanh %109 : vector<2x128xf32>
    %111 = arith.index_cast %c0_i32_69 : i32 to index
    %c0_73 = arith.constant 0 : index
    %c0_74 = arith.constant 0 : index
    %112 = vector.load %arg12[%111, %c0_73, %c0_74] : memref<8x2x128xf32, #tpu.memory_space<vmem>>, vector<1x2x128xf32>
    %113 = vector.shape_cast %112 : vector<1x2x128xf32> to vector<2x128xf32>
    %114 = vector.shape_cast %110 : vector<2x128xf32> to vector<1x2x128xf32>
    tpu.vector_store %arg12[%111, %c0_73, %c0_74], %114 {strides = array<i32>} : memref<8x2x128xf32, #tpu.memory_space<vmem>>, vector<1x2x128xf32>,
    %c1_i32_75 = arith.constant 1 : i32
    %115 = arith.index_cast %c1_i32_75 : i32 to index
    %c0_76 = arith.constant 0 : index
    %c0_77 = arith.constant 0 : index
    %116 = vector.load %arg12[%115, %c0_76, %c0_77] : memref<8x2x128xf32, #tpu.memory_space<vmem>>, vector<1x2x128xf32>
    %117 = vector.shape_cast %116 : vector<1x2x128xf32> to vector<2x128xf32>
    %cst_78 = arith.constant dense<0.000000e+00> : vector<2x128xf32>
    %118 = tpu.matmul %110, %95, %cst_78 {dimension_numbers = #tpu.dot_dimension_numbers<[1], [0], [0], [1], [0, 0, 1, 1], [], []>} : vector<2x128xf32>, vector<128x128xf32>, vector<2x128xf32> -> vector<2x128xf32>
    %119 = arith.addf %117, %118 : vector<2x128xf32>
    %120 = math.tanh %119 : vector<2x128xf32>
    %121 = arith.index_cast %c1_i32_75 : i32 to index
    %c0_79 = arith.constant 0 : index
    %c0_80 = arith.constant 0 : index
    %122 = vector.load %arg12[%121, %c0_79, %c0_80] : memref<8x2x128xf32, #tpu.memory_space<vmem>>, vector<1x2x128xf32>
    %123 = vector.shape_cast %122 : vector<1x2x128xf32> to vector<2x128xf32>
    %124 = vector.shape_cast %120 : vector<2x128xf32> to vector<1x2x128xf32>
    tpu.vector_store %arg12[%121, %c0_79, %c0_80], %124 {strides = array<i32>} : memref<8x2x128xf32, #tpu.memory_space<vmem>>, vector<1x2x128xf32>,
    %c2_i32_81 = arith.constant 2 : i32
    %125 = arith.index_cast %c2_i32_81 : i32 to index
    %c0_82 = arith.constant 0 : index
    %c0_83 = arith.constant 0 : index
    %126 = vector.load %arg12[%125, %c0_82, %c0_83] : memref<8x2x128xf32, #tpu.memory_space<vmem>>, vector<1x2x128xf32>
    %127 = vector.shape_cast %126 : vector<1x2x128xf32> to vector<2x128xf32>
    %cst_84 = arith.constant dense<0.000000e+00> : vector<2x128xf32>
    %128 = tpu.matmul %120, %95, %cst_84 {dimension_numbers = #tpu.dot_dimension_numbers<[1], [0], [0], [1], [0, 0, 1, 1], [], []>} : vector<2x128xf32>, vector<128x128xf32>, vector<2x128xf32> -> vector<2x128xf32>
    %129 = arith.addf %127, %128 : vector<2x128xf32>
    %130 = math.tanh %129 : vector<2x128xf32>
    %131 = arith.index_cast %c2_i32_81 : i32 to index
    %c0_85 = arith.constant 0 : index
    %c0_86 = arith.constant 0 : index
    %132 = vector.load %arg12[%131, %c0_85, %c0_86] : memref<8x2x128xf32, #tpu.memory_space<vmem>>, vector<1x2x128xf32>
    %133 = vector.shape_cast %132 : vector<1x2x128xf32> to vector<2x128xf32>
    %134 = vector.shape_cast %130 : vector<2x128xf32> to vector<1x2x128xf32>
    tpu.vector_store %arg12[%131, %c0_85, %c0_86], %134 {strides = array<i32>} : memref<8x2x128xf32, #tpu.memory_space<vmem>>, vector<1x2x128xf32>,
    %c3_i32_87 = arith.constant 3 : i32
    %135 = arith.index_cast %c3_i32_87 : i32 to index
    %c0_88 = arith.constant 0 : index
    %c0_89 = arith.constant 0 : index
    %136 = vector.load %arg12[%135, %c0_88, %c0_89] : memref<8x2x128xf32, #tpu.memory_space<vmem>>, vector<1x2x128xf32>
    %137 = vector.shape_cast %136 : vector<1x2x128xf32> to vector<2x128xf32>
    %cst_90 = arith.constant dense<0.000000e+00> : vector<2x128xf32>
    %138 = tpu.matmul %130, %95, %cst_90 {dimension_numbers = #tpu.dot_dimension_numbers<[1], [0], [0], [1], [0, 0, 1, 1], [], []>} : vector<2x128xf32>, vector<128x128xf32>, vector<2x128xf32> -> vector<2x128xf32>
    %139 = arith.addf %137, %138 : vector<2x128xf32>
    %140 = math.tanh %139 : vector<2x128xf32>
    %141 = arith.index_cast %c3_i32_87 : i32 to index
    %c0_91 = arith.constant 0 : index
    %c0_92 = arith.constant 0 : index
    %142 = vector.load %arg12[%141, %c0_91, %c0_92] : memref<8x2x128xf32, #tpu.memory_space<vmem>>, vector<1x2x128xf32>
    %143 = vector.shape_cast %142 : vector<1x2x128xf32> to vector<2x128xf32>
    %144 = vector.shape_cast %140 : vector<2x128xf32> to vector<1x2x128xf32>
    tpu.vector_store %arg12[%141, %c0_91, %c0_92], %144 {strides = array<i32>} : memref<8x2x128xf32, #tpu.memory_space<vmem>>, vector<1x2x128xf32>,
    %c4_i32_93 = arith.constant 4 : i32
    %145 = arith.index_cast %c4_i32_93 : i32 to index
    %c0_94 = arith.constant 0 : index
    %c0_95 = arith.constant 0 : index
    %146 = vector.load %arg12[%145, %c0_94, %c0_95] : memref<8x2x128xf32, #tpu.memory_space<vmem>>, vector<1x2x128xf32>
    %147 = vector.shape_cast %146 : vector<1x2x128xf32> to vector<2x128xf32>
    %cst_96 = arith.constant dense<0.000000e+00> : vector<2x128xf32>
    %148 = tpu.matmul %140, %95, %cst_96 {dimension_numbers = #tpu.dot_dimension_numbers<[1], [0], [0], [1], [0, 0, 1, 1], [], []>} : vector<2x128xf32>, vector<128x128xf32>, vector<2x128xf32> -> vector<2x128xf32>
    %149 = arith.addf %147, %148 : vector<2x128xf32>
    %150 = math.tanh %149 : vector<2x128xf32>
    %151 = arith.index_cast %c4_i32_93 : i32 to index
    %c0_97 = arith.constant 0 : index
    %c0_98 = arith.constant 0 : index
    %152 = vector.load %arg12[%151, %c0_97, %c0_98] : memref<8x2x128xf32, #tpu.memory_space<vmem>>, vector<1x2x128xf32>
    %153 = vector.shape_cast %152 : vector<1x2x128xf32> to vector<2x128xf32>
    %154 = vector.shape_cast %150 : vector<2x128xf32> to vector<1x2x128xf32>
    tpu.vector_store %arg12[%151, %c0_97, %c0_98], %154 {strides = array<i32>} : memref<8x2x128xf32, #tpu.memory_space<vmem>>, vector<1x2x128xf32>,
    %c5_i32_99 = arith.constant 5 : i32
    %155 = arith.index_cast %c5_i32_99 : i32 to index
    %c0_100 = arith.constant 0 : index
    %c0_101 = arith.constant 0 : index
    %156 = vector.load %arg12[%155, %c0_100, %c0_101] : memref<8x2x128xf32, #tpu.memory_space<vmem>>, vector<1x2x128xf32>
    %157 = vector.shape_cast %156 : vector<1x2x128xf32> to vector<2x128xf32>
    %cst_102 = arith.constant dense<0.000000e+00> : vector<2x128xf32>
    %158 = tpu.matmul %150, %95, %cst_102 {dimension_numbers = #tpu.dot_dimension_numbers<[1], [0], [0], [1], [0, 0, 1, 1], [], []>} : vector<2x128xf32>, vector<128x128xf32>, vector<2x128xf32> -> vector<2x128xf32>
    %159 = arith.addf %157, %158 : vector<2x128xf32>
    %160 = math.tanh %159 : vector<2x128xf32>
    %161 = arith.index_cast %c5_i32_99 : i32 to index
    %c0_103 = arith.constant 0 : index
    %c0_104 = arith.constant 0 : index
    %162 = vector.load %arg12[%161, %c0_103, %c0_104] : memref<8x2x128xf32, #tpu.memory_space<vmem>>, vector<1x2x128xf32>
    %163 = vector.shape_cast %162 : vector<1x2x128xf32> to vector<2x128xf32>
    %164 = vector.shape_cast %160 : vector<2x128xf32> to vector<1x2x128xf32>
    tpu.vector_store %arg12[%161, %c0_103, %c0_104], %164 {strides = array<i32>} : memref<8x2x128xf32, #tpu.memory_space<vmem>>, vector<1x2x128xf32>,
    %c6_i32_105 = arith.constant 6 : i32
    %165 = arith.index_cast %c6_i32_105 : i32 to index
    %c0_106 = arith.constant 0 : index
    %c0_107 = arith.constant 0 : index
    %166 = vector.load %arg12[%165, %c0_106, %c0_107] : memref<8x2x128xf32, #tpu.memory_space<vmem>>, vector<1x2x128xf32>
    %167 = vector.shape_cast %166 : vector<1x2x128xf32> to vector<2x128xf32>
    %cst_108 = arith.constant dense<0.000000e+00> : vector<2x128xf32>
    %168 = tpu.matmul %160, %95, %cst_108 {dimension_numbers = #tpu.dot_dimension_numbers<[1], [0], [0], [1], [0, 0, 1, 1], [], []>} : vector<2x128xf32>, vector<128x128xf32>, vector<2x128xf32> -> vector<2x128xf32>
    %169 = arith.addf %167, %168 : vector<2x128xf32>
    %170 = math.tanh %169 : vector<2x128xf32>
    %171 = arith.index_cast %c6_i32_105 : i32 to index
    %c0_109 = arith.constant 0 : index
    %c0_110 = arith.constant 0 : index
    %172 = vector.load %arg12[%171, %c0_109, %c0_110] : memref<8x2x128xf32, #tpu.memory_space<vmem>>, vector<1x2x128xf32>
    %173 = vector.shape_cast %172 : vector<1x2x128xf32> to vector<2x128xf32>
    %174 = vector.shape_cast %170 : vector<2x128xf32> to vector<1x2x128xf32>
    tpu.vector_store %arg12[%171, %c0_109, %c0_110], %174 {strides = array<i32>} : memref<8x2x128xf32, #tpu.memory_space<vmem>>, vector<1x2x128xf32>,
    %c7_i32_111 = arith.constant 7 : i32
    %175 = arith.index_cast %c7_i32_111 : i32 to index
    %c0_112 = arith.constant 0 : index
    %c0_113 = arith.constant 0 : index
    %176 = vector.load %arg12[%175, %c0_112, %c0_113] : memref<8x2x128xf32, #tpu.memory_space<vmem>>, vector<1x2x128xf32>
    %177 = vector.shape_cast %176 : vector<1x2x128xf32> to vector<2x128xf32>
    %cst_114 = arith.constant dense<0.000000e+00> : vector<2x128xf32>
    %178 = tpu.matmul %170, %95, %cst_114 {dimension_numbers = #tpu.dot_dimension_numbers<[1], [0], [0], [1], [0, 0, 1, 1], [], []>} : vector<2x128xf32>, vector<128x128xf32>, vector<2x128xf32> -> vector<2x128xf32>
    %179 = arith.addf %177, %178 : vector<2x128xf32>
    %180 = math.tanh %179 : vector<2x128xf32>
    %181 = arith.index_cast %c7_i32_111 : i32 to index
    %c0_115 = arith.constant 0 : index
    %c0_116 = arith.constant 0 : index
    %182 = vector.load %arg12[%181, %c0_115, %c0_116] : memref<8x2x128xf32, #tpu.memory_space<vmem>>, vector<1x2x128xf32>
    %183 = vector.shape_cast %182 : vector<1x2x128xf32> to vector<2x128xf32>
    %184 = vector.shape_cast %180 : vector<2x128xf32> to vector<1x2x128xf32>
    tpu.vector_store %arg12[%181, %c0_115, %c0_116], %184 {strides = array<i32>} : memref<8x2x128xf32, #tpu.memory_space<vmem>>, vector<1x2x128xf32>,
    %c8_i32_117 = arith.constant 8 : i32
    %c1 = arith.constant 1 : index
    %c0_118 = arith.constant 0 : index
    %c0_119 = arith.constant 0 : index
    %185 = vector.load %arg11[%c1, %c0_118, %c0_119] : memref<2x2x128xf32, #tpu.memory_space<vmem>>, vector<1x2x128xf32>
    %186 = vector.shape_cast %185 : vector<1x2x128xf32> to vector<2x128xf32>
    %187 = vector.shape_cast %180 : vector<2x128xf32> to vector<1x2x128xf32>
    tpu.vector_store %arg11[%c1, %c0_118, %c0_119], %187 {strides = array<i32>} : memref<2x2x128xf32, #tpu.memory_space<vmem>>, vector<1x2x128xf32>,
    %c0_120 = arith.constant 0 : index
    %c0_121 = arith.constant 0 : index
    %c0_122 = arith.constant 0 : index
    %188 = vector.load %arg12[%c0_120, %c0_121, %c0_122] : memref<8x2x128xf32, #tpu.memory_space<vmem>>, vector<8x2x128xf32>
    %189 = vector.shape_cast %188 : vector<8x2x128xf32> to vector<16x128xf32>
    %c0_123 = arith.constant 0 : index
    %c0_124 = arith.constant 0 : index
    %190 = vector.load %arg8[%c0_123, %c0_124] : memref<128x128xf32, #tpu.memory_space<vmem>>, vector<128x128xf32>
    %cst_125 = arith.constant dense<0.000000e+00> : vector<16x128xf32>
    %191 = tpu.matmul %189, %190, %cst_125 {dimension_numbers = #tpu.dot_dimension_numbers<[1], [0], [0], [1], [0, 0, 1, 1], [], []>} : vector<16x128xf32>, vector<128x128xf32>, vector<16x128xf32> -> vector<16x128xf32>
    %c0_126 = arith.constant 0 : index
    %c0_127 = arith.constant 0 : index
    %192 = vector.load %arg9[%c0_126, %c0_127] : memref<1x128xf32, #tpu.memory_space<vmem>>, vector<1x128xf32>
    %193 = vector.broadcast %192 : vector<1x128xf32> to vector<16x128xf32>
    %194 = arith.addf %191, %193 : vector<16x128xf32>
    %195 = vector.shape_cast %194 : vector<16x128xf32> to vector<8x2x128xf32>
    %c0_128 = arith.constant 0 : index
    %c0_129 = arith.constant 0 : index
    %c0_130 = arith.constant 0 : index
    %196 = vector.load %arg10[%c0_128, %c0_129, %c0_130] : memref<8x2x128xf32, #tpu.memory_space<vmem>>, vector<8x2x128xf32>
    tpu.vector_store %arg10[%c0_128, %c0_129, %c0_130], %195 {strides = array<i32>} : memref<8x2x128xf32, #tpu.memory_space<vmem>>, vector<8x2x128xf32>,
    return
  }
  func.func @transform_0(%arg0: i32) -> (i32, i32, i32) {
    %c0_i32 = arith.constant 0 : i32
    %c0_i32_0 = arith.constant 0 : i32
    %c0_i32_1 = arith.constant 0 : i32
    return %c0_i32, %arg0, %c0_i32_0 : i32, i32, i32
  }
  func.func @transform_1(%arg0: i32) -> (i32, i32) {
    %c0_i32 = arith.constant 0 : i32
    %c0_i32_0 = arith.constant 0 : i32
    %c0_i32_1 = arith.constant 0 : i32
    return %c0_i32, %c0_i32_0 : i32, i32
  }
  func.func @transform_2(%arg0: i32) -> (i32, i32) {
    %c0_i32 = arith.constant 0 : i32
    %c0_i32_0 = arith.constant 0 : i32
    %c0_i32_1 = arith.constant 0 : i32
    return %c0_i32, %c0_i32_0 : i32, i32
  }
  func.func @transform_3(%arg0: i32) -> (i32, i32) {
    %c0_i32 = arith.constant 0 : i32
    %c0_i32_0 = arith.constant 0 : i32
    %c0_i32_1 = arith.constant 0 : i32
    return %c0_i32, %c0_i32_0 : i32, i32
  }
  func.func @transform_4(%arg0: i32) -> (i32, i32) {
    %c0_i32 = arith.constant 0 : i32
    %c0_i32_0 = arith.constant 0 : i32
    %c0_i32_1 = arith.constant 0 : i32
    return %c0_i32, %c0_i32_0 : i32, i32
  }
  func.func @transform_5(%arg0: i32) -> (i32, i32) {
    %c0_i32 = arith.constant 0 : i32
    %c0_i32_0 = arith.constant 0 : i32
    %c0_i32_1 = arith.constant 0 : i32
    return %c0_i32, %c0_i32_0 : i32, i32
  }
  func.func @transform_6(%arg0: i32) -> (i32, i32) {
    %c0_i32 = arith.constant 0 : i32
    %c0_i32_0 = arith.constant 0 : i32
    %c0_i32_1 = arith.constant 0 : i32
    return %c0_i32, %c0_i32_0 : i32, i32
  }
  func.func @transform_7(%arg0: i32) -> (i32, i32) {
    %c0_i32 = arith.constant 0 : i32
    %c0_i32_0 = arith.constant 0 : i32
    %c0_i32_1 = arith.constant 0 : i32
    return %c0_i32, %c0_i32_0 : i32, i32
  }
  func.func @transform_8(%arg0: i32) -> (i32, i32) {
    %c0_i32 = arith.constant 0 : i32
    %c0_i32_0 = arith.constant 0 : i32
    %c0_i32_1 = arith.constant 0 : i32
    return %c0_i32, %c0_i32_0 : i32, i32
  }
  func.func @transform_9(%arg0: i32) -> (i32, i32, i32) {
    %c0_i32 = arith.constant 0 : i32
    %c0_i32_0 = arith.constant 0 : i32
    %c0_i32_1 = arith.constant 0 : i32
    return %c0_i32, %arg0, %c0_i32_0 : i32, i32, i32
  }
  func.func @transform_10(%arg0: i32) -> (i32, i32, i32) {
    %c0_i32 = arith.constant 0 : i32
    %c0_i32_0 = arith.constant 0 : i32
    %c0_i32_1 = arith.constant 0 : i32
    return %c0_i32, %arg0, %c0_i32_0 : i32, i32, i32
  }
}

</mosaic_0001>

<llo_original>
// kernel: tpu_custom_call.1
$region0: #{tpu_custom_call.1}
  #allocation0 [shape = 'u32[]', space=smem, size = 0x4, offset = 0x4, fixed_abs, tag = 'smem constant byte address 0x4 - core index']
  #allocation1 [shape = 'u32[144,128]{1,0:T(1,128)}', space=vmem, size = 0x12000, scoped, tag = 'internal scratch']
  #allocation2 [shape = 'f32[8,2,128]{2,1,0:T(2,128)}', space=vmem, size = 0x2000, scoped, tag = 'scratch operand']
  %s0 = inlined_call_operand.hbm [shape: f32[8,2,128], index: 0, kind: input, shape index: {}]
  %s1 = inlined_call_operand.hbm [shape: f32[128,128], index: 1, kind: input, shape index: {}]
  %s2 = inlined_call_operand.hbm [shape: f32[128,128], index: 2, kind: input, shape index: {}]
  %s3 = inlined_call_operand.vmem [shape: f32[1,128], index: 3, kind: input, shape index: {}]
  %s4 = inlined_call_operand.hbm [shape: f32[128,128], index: 4, kind: input, shape index: {}]
  %s5 = inlined_call_operand.hbm [shape: f32[128,128], index: 5, kind: input, shape index: {}]
  %s6 = inlined_call_operand.vmem [shape: f32[1,128], index: 6, kind: input, shape index: {}]
  %s7 = inlined_call_operand.hbm [shape: f32[128,128], index: 7, kind: input, shape index: {}]
  %s8 = inlined_call_operand.vmem [shape: f32[1,128], index: 8, kind: input, shape index: {}]
  %s9 = inlined_call_operand.hbm [shape: f32[8,2,128], index: 9, kind: output, shape index: {0}]
  %s10 = inlined_call_operand.hbm [shape: f32[2,2,128], index: 10, kind: output, shape index: {1}]
  %11 = xla_tuple %s9, %s10
  %s12 = sld [smem:[#allocation0]]
  $region78: #{tpu_custom_call.1} parent=0
    _
  %s14 = ssub.s32 1, %s12
  %s15 = scalar_select 0, %s14, %s12
  $region1: #{tpu_custom_call.1} parent=0
    #allocation3 [shape = 'u8[8192]{0}', space=vmem, size = 0x2000, scoped, tag = 'input window, operand 0, single buffered']
    #allocation4 [shape = 's32[1]{0}', space=sflag, size = 0x4, scoped, tag = 'scoped memory for tpu_custom_call.1']
    #allocation5 [shape = 's32[1]{0}', space=sflag, size = 0x4, scoped, tag = 'scoped memory for tpu_custom_call.1']
    #allocation6 [shape = 'u8[65536]{0}', space=vmem, size = 0x10000, scoped, tag = 'input window, operand 1, single buffered']
    #allocation7 [shape = 's32[1]{0}', space=sflag, size = 0x4, scoped, tag = 'scoped memory for tpu_custom_call.1']
    #allocation8 [shape = 'u8[65536]{0}', space=vmem, size = 0x10000, scoped, tag = 'input window, operand 2, single buffered']
    #allocation9 [shape = 'u8[65536]{0}', space=vmem, size = 0x10000, scoped, tag = 'input window, operand 4, single buffered']
    #allocation10 [shape = 's32[1]{0}', space=sflag, size = 0x4, scoped, tag = 'scoped memory for tpu_custom_call.1']
    #allocation11 [shape = 'u8[65536]{0}', space=vmem, size = 0x10000, scoped, tag = 'input window, operand 5, single buffered']
    #allocation12 [shape = 'u8[65536]{0}', space=vmem, size = 0x10000, scoped, tag = 'input window, operand 7, single buffered']
    #allocation13 [shape = 's32[1]{0}', space=sflag, size = 0x4, scoped, tag = 'scoped memory for tpu_custom_call.1']
    #allocation14 [shape = 'u8[8192]{0}', space=vmem, size = 0x2000, scoped, tag = 'output window, operand 0, single buffered']
    #allocation15 [shape = 'u8[2048]{0}', space=vmem, size = 0x800, scoped, tag = 'output window, operand 1, single buffered']
    #allocation16 [shape = 's32[1]{0}', space=sflag, size = 0x4, scoped, tag = 'scoped memory for tpu_custom_call.1']
    %16 = vsyncpa [#allocation4], 0
    %17 = vsyncpa [#allocation7], 0
    %18 = vsyncpa [#allocation10], 0
    %19 = vsyncpa [#allocation13], 0
    %20 = vsyncpa [#allocation5], 0
    %21 = vsyncpa [#allocation16], 0
    // Predicated region
    $region2: #{tpu_custom_call.1} parent=1 // pred_check
      _
    $region3: #{tpu_custom_call.1} parent=1 // pred_check_branch
      %23 = sbr.rel (0) target = $region5
    $region4: #{tpu_custom_call.1} parent=1 // pred_region
      %s25 = ssub.s32 256, 256
      %26 = vsyncadd [#allocation4], %s25
      %s27 = sshll.u32 [#allocation3], 4
      %s28 = int_to_ptr.vmem [resolvable:$true] %s27
      %33 = dma.hbm_to_vmem [thread:$0]  %s0, 256, %s28, [#allocation4], 32, 32, 2
    $region5: #{tpu_custom_call.1} parent=1 // pred_fallthru
      _
    // Predicated region
    $region6: #{tpu_custom_call.1} parent=1 // pred_check
      _
    $region7: #{tpu_custom_call.1} parent=1 // pred_check_branch
      %35 = sbr.rel (0) target = $region9
    $region8: #{tpu_custom_call.1} parent=1 // pred_region
      %s37 = ssub.s32 2048, 2048
      %38 = vsyncadd [#allocation7], %s37
      %s39 = sshll.u32 [#allocation6], 4
      %s40 = int_to_ptr.vmem [resolvable:$true] %s39
      %45 = dma.hbm_to_vmem [thread:$0]  %s1, 2048, %s40, [#allocation7], 128, 128, 8
    $region9: #{tpu_custom_call.1} parent=1 // pred_fallthru
      _
    // Predicated region
    $region10: #{tpu_custom_call.1} parent=1 // pred_check
      _
    $region11: #{tpu_custom_call.1} parent=1 // pred_check_branch
      %47 = sbr.rel (0) target = $region13
    $region12: #{tpu_custom_call.1} parent=1 // pred_region
      %s49 = ssub.s32 2048, 2048
      %50 = vsyncadd [#allocation7], %s49
      %s51 = sshll.u32 [#allocation8], 4
      %s52 = int_to_ptr.vmem [resolvable:$true] %s51
      %57 = dma.hbm_to_vmem [thread:$0]  %s2, 2048, %s52, [#allocation7], 128, 128, 8
    $region13: #{tpu_custom_call.1} parent=1 // pred_fallthru
      _
    // Predicated region
    $region14: #{tpu_custom_call.1} parent=1 // pred_check
      _
    $region15: #{tpu_custom_call.1} parent=1 // pred_check_branch
      %59 = sbr.rel (0) target = $region17
    $region16: #{tpu_custom_call.1} parent=1 // pred_region
      _
    $region17: #{tpu_custom_call.1} parent=1 // pred_fallthru
      _
    // Predicated region
    $region18: #{tpu_custom_call.1} parent=1 // pred_check
      _
    $region19: #{tpu_custom_call.1} parent=1 // pred_check_branch
      %61 = sbr.rel (0) target = $region21
    $region20: #{tpu_custom_call.1} parent=1 // pred_region
      %s63 = ssub.s32 2048, 2048
      %64 = vsyncadd [#allocation10], %s63
      %s65 = sshll.u32 [#allocation9], 4
      %s66 = int_to_ptr.vmem [resolvable:$true] %s65
      %71 = dma.hbm_to_vmem [thread:$0]  %s4, 2048, %s66, [#allocation10], 128, 128, 8
    $region21: #{tpu_custom_call.1} parent=1 // pred_fallthru
      _
    // Predicated region
    $region22: #{tpu_custom_call.1} parent=1 // pred_check
      _
    $region23: #{tpu_custom_call.1} parent=1 // pred_check_branch
      %73 = sbr.rel (0) target = $region25
    $region24: #{tpu_custom_call.1} parent=1 // pred_region
      %s75 = ssub.s32 2048, 2048
      %76 = vsyncadd [#allocation10], %s75
      %s77 = sshll.u32 [#allocation11], 4
      %s78 = int_to_ptr.vmem [resolvable:$true] %s77
      %83 = dma.hbm_to_vmem [thread:$0]  %s5, 2048, %s78, [#allocation10], 128, 128, 8
    $region25: #{tpu_custom_call.1} parent=1 // pred_fallthru
      _
    // Predicated region
    $region26: #{tpu_custom_call.1} parent=1 // pred_check
      _
    $region27: #{tpu_custom_call.1} parent=1 // pred_check_branch
      %85 = sbr.rel (0) target = $region29
    $region28: #{tpu_custom_call.1} parent=1 // pred_region
      _
    $region29: #{tpu_custom_call.1} parent=1 // pred_fallthru
      _
    // Predicated region
    $region30: #{tpu_custom_call.1} parent=1 // pred_check
      _
    $region31: #{tpu_custom_call.1} parent=1 // pred_check_branch
      %87 = sbr.rel (0) target = $region33
    $region32: #{tpu_custom_call.1} parent=1 // pred_region
      %s89 = ssub.s32 2048, 2048
      %90 = vsyncadd [#allocation13], %s89
      %s91 = sshll.u32 [#allocation12], 4
      %s92 = int_to_ptr.vmem [resolvable:$true] %s91
      %97 = dma.hbm_to_vmem [thread:$0]  %s7, 2048, %s92, [#allocation13], 128, 128, 8
    $region33: #{tpu_custom_call.1} parent=1 // pred_fallthru
      _
    // Predicated region
    $region34: #{tpu_custom_call.1} parent=1 // pred_check
      _
    $region35: #{tpu_custom_call.1} parent=1 // pred_check_branch
      %99 = sbr.rel (0) target = $region37
    $region36: #{tpu_custom_call.1} parent=1 // pred_region
      _
    $region37: #{tpu_custom_call.1} parent=1 // pred_fallthru
      _
    // Predicated region
    $region38: #{tpu_custom_call.1} parent=1 // pred_check
      _
    $region39: #{tpu_custom_call.1} parent=1 // pred_check_branch
      %101 = sbr.rel (0) target = $region41
    $region40: #{tpu_custom_call.1} parent=1 // pred_region
      %102 = dma.done [#allocation4], 256
    $region41: #{tpu_custom_call.1} parent=1 // pred_fallthru
      _
    // Predicated region
    $region42: #{tpu_custom_call.1} parent=1 // pred_check
      _
    $region43: #{tpu_custom_call.1} parent=1 // pred_check_branch
      %104 = sbr.rel (0) target = $region45
    $region44: #{tpu_custom_call.1} parent=1 // pred_region
      %105 = dma.done [#allocation7], 2048
    $region45: #{tpu_custom_call.1} parent=1 // pred_fallthru
      _
    // Predicated region
    $region46: #{tpu_custom_call.1} parent=1 // pred_check
      _
    $region47: #{tpu_custom_call.1} parent=1 // pred_check_branch
      %107 = sbr.rel (0) target = $region49
    $region48: #{tpu_custom_call.1} parent=1 // pred_region
      %108 = dma.done [#allocation7], 2048
    $region49: #{tpu_custom_call.1} parent=1 // pred_fallthru
      _
    // Predicated region
    $region50: #{tpu_custom_call.1} parent=1 // pred_check
      _
    $region51: #{tpu_custom_call.1} parent=1 // pred_check_branch
      %110 = sbr.rel (0) target = $region53
    $region52: #{tpu_custom_call.1} parent=1 // pred_region
      %111 = dma.done [#allocation10], 2048
    $region53: #{tpu_custom_call.1} parent=1 // pred_fallthru
      _
    // Predicated region
    $region54: #{tpu_custom_call.1} parent=1 // pred_check
      _
    $region55: #{tpu_custom_call.1} parent=1 // pred_check_branch
      %113 = sbr.rel (0) target = $region57
    $region56: #{tpu_custom_call.1} parent=1 // pred_region
      %114 = dma.done [#allocation10], 2048
    $region57: #{tpu_custom_call.1} parent=1 // pred_fallthru
      _
    // Predicated region
    $region58: #{tpu_custom_call.1} parent=1 // pred_check
      _
    $region59: #{tpu_custom_call.1} parent=1 // pred_check_branch
      %116 = sbr.rel (0) target = $region61
    $region60: #{tpu_custom_call.1} parent=1 // pred_region
      %117 = dma.done [#allocation13], 2048
    $region61: #{tpu_custom_call.1} parent=1 // pred_fallthru
      _
    %v118 = vld [vmem:[#allocation6] sm:$0xff]
    %v119 = vld [vmem:[#allocation6 + $0x8] sm:$0xff]
    %v120 = vld [vmem:[#allocation6 + $0x10] sm:$0xff]
    %v121 = vld [vmem:[#allocation6 + $0x18] sm:$0xff]
    %v122 = vld [vmem:[#allocation6 + $0x20] sm:$0xff]
    %v123 = vld [vmem:[#allocation6 + $0x28] sm:$0xff]
    %v124 = vld [vmem:[#allocation6 + $0x30] sm:$0xff]
    %v125 = vld [vmem:[#allocation6 + $0x38] sm:$0xff]
    %v126 = vld [vmem:[#allocation6 + $0x40] sm:$0xff]
    %v127 = vld [vmem:[#allocation6 + $0x48] sm:$0xff]
    %v128 = vld [vmem:[#allocation6 + $0x50] sm:$0xff]
    %v129 = vld [vmem:[#allocation6 + $0x58] sm:$0xff]
    %v130 = vld [vmem:[#allocation6 + $0x60] sm:$0xff]
    %v131 = vld [vmem:[#allocation6 + $0x68] sm:$0xff]
    %v132 = vld [vmem:[#allocation6 + $0x70] sm:$0xff]
    %v133 = vld [vmem:[#allocation6 + $0x78] sm:$0xff]
    %v134 = vld [vmem:[#allocation8] sm:$0xff]
    %v135 = vld [vmem:[#allocation8 + $0x8] sm:$0xff]
    %v136 = vld [vmem:[#allocation8 + $0x10] sm:$0xff]
    %v137 = vld [vmem:[#allocation8 + $0x18] sm:$0xff]
    %v138 = vld [vmem:[#allocation8 + $0x20] sm:$0xff]
    %v139 = vld [vmem:[#allocation8 + $0x28] sm:$0xff]
    %v140 = vld [vmem:[#allocation8 + $0x30] sm:$0xff]
    %v141 = vld [vmem:[#allocation8 + $0x38] sm:$0xff]
    %v142 = vld [vmem:[#allocation8 + $0x40] sm:$0xff]
    %v143 = vld [vmem:[#allocation8 + $0x48] sm:$0xff]
    %v144 = vld [vmem:[#allocation8 + $0x50] sm:$0xff]
    %v145 = vld [vmem:[#allocation8 + $0x58] sm:$0xff]
    %v146 = vld [vmem:[#allocation8 + $0x60] sm:$0xff]
    %v147 = vld [vmem:[#allocation8 + $0x68] sm:$0xff]
    %v148 = vld [vmem:[#allocation8 + $0x70] sm:$0xff]
    %v149 = vld [vmem:[#allocation8 + $0x78] sm:$0xff]
    %v150 = vld [vmem:[%s3] sm:$0x1]
    %v151 = vld [vmem:[#allocation3] sm:$0x3]
    %v152 = vld [vmem:[#allocation3 + $0x2] sm:$0x3]
    %v153 = vld [vmem:[#allocation3 + $0x4] sm:$0x3]
    %v154 = vld [vmem:[#allocation3 + $0x6] sm:$0x3]
    %v155 = vld [vmem:[#allocation3 + $0x8] sm:$0x3]
    %v156 = vld [vmem:[#allocation3 + $0xa] sm:$0x3]
    %v157 = vld [vmem:[#allocation3 + $0xc] sm:$0x3]
    %v158 = vld [vmem:[#allocation3 + $0xe] sm:$0x3]
    %v160 = vlaneseq
    %v161 = vshrl.u32 %v160, 7
    %v162 = vsub.s32 0, %v161
    %v163 = vrot.slane %v150, %v162
    %v173 = vcombine.low %v151, %v152
    %v174 = vcombine.low %v153, %v154
    %v176 = vunpack.c.l.s4 1983009808
    %v177 = vunpack.c.0.s8 %v176
    %v178 = vlaneseq
    %v179 = vshrl.u32 %v178, 7
    %v180 = vsub.s32 %v177, %v179
    %v181 = vrot.slane %v173, %v180
    %v183 = vunpack.c.l.s4 1983009808
    %v184 = vunpack.c.0.s8 %v183
    %v185 = vlaneseq
    %v186 = vshrl.u32 %v185, 7
    %v187 = vsub.s32 %v184, %v186
    %v188 = vrot.slane %v174, %v187
    %v189 = vcombine.low %v181, %v188
    %v190 = vcombine.low %v155, %v156
    %v191 = vcombine.low %v157, %v158
    %v193 = vunpack.c.l.s4 1983009808
    %v194 = vunpack.c.0.s8 %v193
    %v195 = vlaneseq
    %v196 = vshrl.u32 %v195, 7
    %v197 = vsub.s32 %v194, %v196
    %v198 = vrot.slane %v190, %v197
    %v200 = vunpack.c.l.s4 1983009808
    %v201 = vunpack.c.0.s8 %v200
    %v202 = vlaneseq
    %v203 = vshrl.u32 %v202, 7
    %v204 = vsub.s32 %v201, %v203
    %v205 = vrot.slane %v191, %v204
    %v206 = vcombine.low %v198, %v205
    %209 = vmatprep.subr.mxu0 0.0
    %210 = vmatpush1.msra.mxu0 %v133
    %211 = vmatprep.subr.mxu0 0.0
    %212 = vmatpush1.msra.mxu0 %v132
    %213 = vmatprep.subr.mxu0 0.0
    %214 = vmatpush1.msra.mxu0 %v131
    %215 = vmatprep.subr.mxu0 0.0
    %216 = vmatpush1.msra.mxu0 %v130
    %217 = vmatprep.subr.mxu0 0.0
    %218 = vmatpush1.msra.mxu0 %v129
    %219 = vmatprep.subr.mxu0 0.0
    %220 = vmatpush1.msra.mxu0 %v128
    %221 = vmatprep.subr.mxu0 0.0
    %222 = vmatpush1.msra.mxu0 %v127
    %223 = vmatprep.subr.mxu0 0.0
    %224 = vmatpush1.msra.mxu0 %v126
    %225 = vmatprep.subr.mxu0 0.0
    %226 = vmatpush1.msra.mxu0 %v125
    %227 = vmatprep.subr.mxu0 0.0
    %228 = vmatpush1.msra.mxu0 %v124
    %229 = vmatprep.subr.mxu0 0.0
    %230 = vmatpush1.msra.mxu0 %v123
    %231 = vmatprep.subr.mxu0 0.0
    %232 = vmatpush1.msra.mxu0 %v122
    %233 = vmatprep.subr.mxu0 0.0
    %234 = vmatpush1.msra.mxu0 %v121
    %235 = vmatprep.subr.mxu0 0.0
    %236 = vmatpush1.msra.mxu0 %v120
    %237 = vmatprep.subr.mxu0 0.0
    %238 = vmatpush1.msra.mxu0 %v119
    %239 = vmatprep.subr.mxu0 0.0
    %240 = vmatpush1.msra.mxu0 %v118
    %241 = vmatprep.subr.mxu0 0.0
    %242 = vmatpush2.msra.mxu0 0.0
    %243 = vmatprep.subr.mxu0 0.0
    %244 = vmatpush2.msra.mxu0 0.0
    %245 = vmatprep.subr.mxu0 0.0
    %246 = vmatpush2.msra.mxu0 0.0
    %247 = vmatprep.subr.mxu0 0.0
    %248 = vmatpush2.msra.mxu0 0.0
    %249 = vmatprep.subr.mxu0 0.0
    %250 = vmatpush2.msra.mxu0 0.0
    %251 = vmatprep.subr.mxu0 0.0
    %252 = vmatpush2.msra.mxu0 0.0
    %253 = vmatprep.subr.mxu0 0.0
    %254 = vmatpush2.msra.mxu0 0.0
    %255 = vmatprep.subr.mxu0 0.0
    %256 = vmatpush2.msra.mxu0 0.0
    %257 = vmatprep.subr.mxu0 0.0
    %258 = vmatpush2.msra.mxu0 0.0
    %259 = vmatprep.subr.mxu0 0.0
    %260 = vmatpush2.msra.mxu0 0.0
    %261 = vmatprep.subr.mxu0 0.0
    %262 = vmatpush2.msra.mxu0 0.0
    %263 = vmatprep.subr.mxu0 0.0
    %264 = vmatpush2.msra.mxu0 0.0
    %265 = vmatprep.subr.mxu0 0.0
    %266 = vmatpush2.msra.mxu0 0.0
    %267 = vmatprep.subr.mxu0 0.0
    %268 = vmatpush2.msra.mxu0 0.0
    %269 = vmatprep.subr.mxu0 0.0
    %270 = vmatpush2.msra.mxu0 0.0
    %271 = vmatprep.subr.mxu0 0.0
    %272 = vmatpush2.msra.mxu0 0.0
    %273 = vmatprep.mubr.f32.mxu0 0.0
    %274 = vmatmul.mubr.f32.gmra.mxu0 %v189
    %v275 = vpop.f32.mrf.mxu0
    %v276 = vadd.f32 %v163, %v275
    %v277 = vpop.f32.mrf.mxu0
    %278 = vmatprep.mubr.f32.mxu0 0.0
    %279 = vmatmul.mubr.f32.gmra.mxu0 %v206
    %v280 = vpop.f32.mrf.mxu0
    %v281 = vadd.f32 %v163, %v280
    %v282 = vpop.f32.mrf.mxu0
    %283 = vdwg.mxu0
    %v286 = vcombine.high %v276, %v276
    %v288 = vunpack.c.l.s4 1983009808
    %v289 = vunpack.c.0.s8 %v288
    %v290 = vlaneseq
    %v291 = vshrl.u32 %v290, 7
    %v292 = vsub.s32 %v289, %v291
    %v293 = vrot.slane %v276, %v292
    %v295 = vunpack.c.l.s4 1983009808
    %v296 = vunpack.c.0.s8 %v295
    %v297 = vlaneseq
    %v298 = vshrl.u32 %v297, 7
    %v299 = vsub.s32 %v296, %v298
    %v300 = vrot.slane %v286, %v299
    %v301 = vcombine.high %v293, %v293
    %v302 = vcombine.high %v300, %v300
    %v303 = vcombine.high %v281, %v281
    %v305 = vunpack.c.l.s4 1983009808
    %v306 = vunpack.c.0.s8 %v305
    %v307 = vlaneseq
    %v308 = vshrl.u32 %v307, 7
    %v309 = vsub.s32 %v306, %v308
    %v310 = vrot.slane %v281, %v309
    %v312 = vunpack.c.l.s4 1983009808
    %v313 = vunpack.c.0.s8 %v312
    %v314 = vlaneseq
    %v315 = vshrl.u32 %v314, 7
    %v316 = vsub.s32 %v313, %v315
    %v317 = vrot.slane %v303, %v316
    %v318 = vcombine.high %v310, %v310
    %v319 = vcombine.high %v317, %v317
    %328 = vst [vmem:[#allocation2] sm:$0x3] %v293
    %329 = vst [vmem:[#allocation2 + $0x2] sm:$0x3] %v301
    %330 = vst [vmem:[#allocation2 + $0x4] sm:$0x3] %v300
    %331 = vst [vmem:[#allocation2 + $0x6] sm:$0x3] %v302
    %332 = vst [vmem:[#allocation2 + $0x8] sm:$0x3] %v310
    %333 = vst [vmem:[#allocation2 + $0xa] sm:$0x3] %v318
    %334 = vst [vmem:[#allocation2 + $0xc] sm:$0x3] %v317
    %335 = vst [vmem:[#allocation2 + $0xe] sm:$0x3] %v319
    %v336 = vld [vmem:[#allocation2] sm:$0x3]
    %337 = vmatprep.subr.mxu0 0.0
    %338 = vmatpush1.msra.mxu0 %v149
    %339 = vmatprep.subr.mxu0 0.0
    %340 = vmatpush1.msra.mxu0 %v148
    %341 = vmatprep.subr.mxu0 0.0
    %342 = vmatpush1.msra.mxu0 %v147
    %343 = vmatprep.subr.mxu0 0.0
    %344 = vmatpush1.msra.mxu0 %v146
    %345 = vmatprep.subr.mxu0 0.0
    %346 = vmatpush1.msra.mxu0 %v145
    %347 = vmatprep.subr.mxu0 0.0
    %348 = vmatpush1.msra.mxu0 %v144
    %349 = vmatprep.subr.mxu0 0.0
    %350 = vmatpush1.msra.mxu0 %v143
    %351 = vmatprep.subr.mxu0 0.0
    %352 = vmatpush1.msra.mxu0 %v142
    %353 = vmatprep.subr.mxu0 0.0
    %354 = vmatpush1.msra.mxu0 %v141
    %355 = vmatprep.subr.mxu0 0.0
    %356 = vmatpush1.msra.mxu0 %v140
    %357 = vmatprep.subr.mxu0 0.0
    %358 = vmatpush1.msra.mxu0 %v139
    %359 = vmatprep.subr.mxu0 0.0
    %360 = vmatpush1.msra.mxu0 %v138
    %361 = vmatprep.subr.mxu0 0.0
    %362 = vmatpush1.msra.mxu0 %v137
    %363 = vmatprep.subr.mxu0 0.0
    %364 = vmatpush1.msra.mxu0 %v136
    %365 = vmatprep.subr.mxu0 0.0
    %366 = vmatpush1.msra.mxu0 %v135
    %367 = vmatprep.subr.mxu0 0.0
    %368 = vmatpush1.msra.mxu0 %v134
    %369 = vmatprep.subr.mxu0 0.0
    %370 = vmatpush2.msra.mxu0 0.0
    %371 = vmatprep.subr.mxu0 0.0
    %372 = vmatpush2.msra.mxu0 0.0
    %373 = vmatprep.subr.mxu0 0.0
    %374 = vmatpush2.msra.mxu0 0.0
    %375 = vmatprep.subr.mxu0 0.0
    %376 = vmatpush2.msra.mxu0 0.0
    %377 = vmatprep.subr.mxu0 0.0
    %378 = vmatpush2.msra.mxu0 0.0
    %379 = vmatprep.subr.mxu0 0.0
    %380 = vmatpush2.msra.mxu0 0.0
    %381 = vmatprep.subr.mxu0 0.0
    %382 = vmatpush2.msra.mxu0 0.0
    %383 = vmatprep.subr.mxu0 0.0
    %384 = vmatpush2.msra.mxu0 0.0
    %385 = vmatprep.subr.mxu0 0.0
    %386 = vmatpush2.msra.mxu0 0.0
    %387 = vmatprep.subr.mxu0 0.0
    %388 = vmatpush2.msra.mxu0 0.0
    %389 = vmatprep.subr.mxu0 0.0
    %390 = vmatpush2.msra.mxu0 0.0
    %391 = vmatprep.subr.mxu0 0.0
    %392 = vmatpush2.msra.mxu0 0.0
    %393 = vmatprep.subr.mxu0 0.0
    %394 = vmatpush2.msra.mxu0 0.0
    %395 = vmatprep.subr.mxu0 0.0
    %396 = vmatpush2.msra.mxu0 0.0
    %397 = vmatprep.subr.mxu0 0.0
    %398 = vmatpush2.msra.mxu0 0.0
    %399 = vmatprep.subr.mxu0 0.0
    %400 = vmatpush2.msra.mxu0 0.0
    %401 = vmatprep.mubr.f32.mxu0 0.0
    %402 = vmatmul.mubr.f32.gmra.mxu0 0.0
    %v403 = vpop.f32.mrf.mxu0
    %v404 = vadd.f32 0.0, %v403
    %v405 = vpop.f32.mrf.mxu0
    %406 = vdwg.mxu0
    %v407 = vadd.f32 %v336, %v404
    %v408 = vtanh.pop %v407
    %409 = vst [vmem:[#allocation2] sm:$0x3] %v408
    %s410 = scalar_lea.vmem [#allocation2], 2
    %v411 = vld [vmem:[%s410] sm:$0x3]
    %412 = vmatprep.subr.mxu0 0.0
    %413 = vmatpush1.msra.mxu0 %v149
    %414 = vmatprep.subr.mxu0 0.0
    %415 = vmatpush1.msra.mxu0 %v148
    %416 = vmatprep.subr.mxu0 0.0
    %417 = vmatpush1.msra.mxu0 %v147
    %418 = vmatprep.subr.mxu0 0.0
    %419 = vmatpush1.msra.mxu0 %v146
    %420 = vmatprep.subr.mxu0 0.0
    %421 = vmatpush1.msra.mxu0 %v145
    %422 = vmatprep.subr.mxu0 0.0
    %423 = vmatpush1.msra.mxu0 %v144
    %424 = vmatprep.subr.mxu0 0.0
    %425 = vmatpush1.msra.mxu0 %v143
    %426 = vmatprep.subr.mxu0 0.0
    %427 = vmatpush1.msra.mxu0 %v142
    %428 = vmatprep.subr.mxu0 0.0
    %429 = vmatpush1.msra.mxu0 %v141
    %430 = vmatprep.subr.mxu0 0.0
    %431 = vmatpush1.msra.mxu0 %v140
    %432 = vmatprep.subr.mxu0 0.0
    %433 = vmatpush1.msra.mxu0 %v139
    %434 = vmatprep.subr.mxu0 0.0
    %435 = vmatpush1.msra.mxu0 %v138
    %436 = vmatprep.subr.mxu0 0.0
    %437 = vmatpush1.msra.mxu0 %v137
    %438 = vmatprep.subr.mxu0 0.0
    %439 = vmatpush1.msra.mxu0 %v136
    %440 = vmatprep.subr.mxu0 0.0
    %441 = vmatpush1.msra.mxu0 %v135
    %442 = vmatprep.subr.mxu0 0.0
    %443 = vmatpush1.msra.mxu0 %v134
    %444 = vmatprep.subr.mxu0 0.0
    %445 = vmatpush2.msra.mxu0 0.0
    %446 = vmatprep.subr.mxu0 0.0
    %447 = vmatpush2.msra.mxu0 0.0
    %448 = vmatprep.subr.mxu0 0.0
    %449 = vmatpush2.msra.mxu0 0.0
    %450 = vmatprep.subr.mxu0 0.0
    %451 = vmatpush2.msra.mxu0 0.0
    %452 = vmatprep.subr.mxu0 0.0
    %453 = vmatpush2.msra.mxu0 0.0
    %454 = vmatprep.subr.mxu0 0.0
    %455 = vmatpush2.msra.mxu0 0.0
    %456 = vmatprep.subr.mxu0 0.0
    %457 = vmatpush2.msra.mxu0 0.0
    %458 = vmatprep.subr.mxu0 0.0
    %459 = vmatpush2.msra.mxu0 0.0
    %460 = vmatprep.subr.mxu0 0.0
    %461 = vmatpush2.msra.mxu0 0.0
    %462 = vmatprep.subr.mxu0 0.0
    %463 = vmatpush2.msra.mxu0 0.0
    %464 = vmatprep.subr.mxu0 0.0
    %465 = vmatpush2.msra.mxu0 0.0
    %466 = vmatprep.subr.mxu0 0.0
    %467 = vmatpush2.msra.mxu0 0.0
    %468 = vmatprep.subr.mxu0 0.0
    %469 = vmatpush2.msra.mxu0 0.0
    %470 = vmatprep.subr.mxu0 0.0
    %471 = vmatpush2.msra.mxu0 0.0
    %472 = vmatprep.subr.mxu0 0.0
    %473 = vmatpush2.msra.mxu0 0.0
    %474 = vmatprep.subr.mxu0 0.0
    %475 = vmatpush2.msra.mxu0 0.0
    %476 = vmatprep.mubr.f32.mxu0 0.0
    %477 = vmatmul.mubr.f32.gmra.mxu0 %v408
    %v478 = vpop.f32.mrf.mxu0
    %v479 = vadd.f32 0.0, %v478
    %v480 = vpop.f32.mrf.mxu0
    %481 = vdwg.mxu0
    %v482 = vadd.f32 %v411, %v479
    %v483 = vtanh.pop %v482
    %484 = vst [vmem:[%s410] sm:$0x3] %v483
    %s485 = scalar_lea.vmem [#allocation2], 4
    %v486 = vld [vmem:[%s485] sm:$0x3]
    %487 = vmatprep.subr.mxu0 0.0
    %488 = vmatpush1.msra.mxu0 %v149
    %489 = vmatprep.subr.mxu0 0.0
    %490 = vmatpush1.msra.mxu0 %v148
    %491 = vmatprep.subr.mxu0 0.0
    %492 = vmatpush1.msra.mxu0 %v147
    %493 = vmatprep.subr.mxu0 0.0
    %494 = vmatpush1.msra.mxu0 %v146
    %495 = vmatprep.subr.mxu0 0.0
    %496 = vmatpush1.msra.mxu0 %v145
    %497 = vmatprep.subr.mxu0 0.0
    %498 = vmatpush1.msra.mxu0 %v144
    %499 = vmatprep.subr.mxu0 0.0
    %500 = vmatpush1.msra.mxu0 %v143
    %501 = vmatprep.subr.mxu0 0.0
    %502 = vmatpush1.msra.mxu0 %v142
    %503 = vmatprep.subr.mxu0 0.0
    %504 = vmatpush1.msra.mxu0 %v141
    %505 = vmatprep.subr.mxu0 0.0
    %506 = vmatpush1.msra.mxu0 %v140
    %507 = vmatprep.subr.mxu0 0.0
    %508 = vmatpush1.msra.mxu0 %v139
    %509 = vmatprep.subr.mxu0 0.0
    %510 = vmatpush1.msra.mxu0 %v138
    %511 = vmatprep.subr.mxu0 0.0
    %512 = vmatpush1.msra.mxu0 %v137
    %513 = vmatprep.subr.mxu0 0.0
    %514 = vmatpush1.msra.mxu0 %v136
    %515 = vmatprep.subr.mxu0 0.0
    %516 = vmatpush1.msra.mxu0 %v135
    %517 = vmatprep.subr.mxu0 0.0
    %518 = vmatpush1.msra.mxu0 %v134
    %519 = vmatprep.subr.mxu0 0.0
    %520 = vmatpush2.msra.mxu0 0.0
    %521 = vmatprep.subr.mxu0 0.0
    %522 = vmatpush2.msra.mxu0 0.0
    %523 = vmatprep.subr.mxu0 0.0
    %524 = vmatpush2.msra.mxu0 0.0
    %525 = vmatprep.subr.mxu0 0.0
    %526 = vmatpush2.msra.mxu0 0.0
    %527 = vmatprep.subr.mxu0 0.0
    %528 = vmatpush2.msra.mxu0 0.0
    %529 = vmatprep.subr.mxu0 0.0
    %530 = vmatpush2.msra.mxu0 0.0
    %531 = vmatprep.subr.mxu0 0.0
    %532 = vmatpush2.msra.mxu0 0.0
    %533 = vmatprep.subr.mxu0 0.0
    %534 = vmatpush2.msra.mxu0 0.0
    %535 = vmatprep.subr.mxu0 0.0
    %536 = vmatpush2.msra.mxu0 0.0
    %537 = vmatprep.subr.mxu0 0.0
    %538 = vmatpush2.msra.mxu0 0.0
    %539 = vmatprep.subr.mxu0 0.0
    %540 = vmatpush2.msra.mxu0 0.0
    %541 = vmatprep.subr.mxu0 0.0
    %542 = vmatpush2.msra.mxu0 0.0
    %543 = vmatprep.subr.mxu0 0.0
    %544 = vmatpush2.msra.mxu0 0.0
    %545 = vmatprep.subr.mxu0 0.0
    %546 = vmatpush2.msra.mxu0 0.0
    %547 = vmatprep.subr.mxu0 0.0
    %548 = vmatpush2.msra.mxu0 0.0
    %549 = vmatprep.subr.mxu0 0.0
    %550 = vmatpush2.msra.mxu0 0.0
    %551 = vmatprep.mubr.f32.mxu0 0.0
    %552 = vmatmul.mubr.f32.gmra.mxu0 %v483
    %v553 = vpop.f32.mrf.mxu0
    %v554 = vadd.f32 0.0, %v553
    %v555 = vpop.f32.mrf.mxu0
    %556 = vdwg.mxu0
    %v557 = vadd.f32 %v486, %v554
    %v558 = vtanh.pop %v557
    %559 = vst [vmem:[%s485] sm:$0x3] %v558
    %s560 = scalar_lea.vmem [#allocation2], 6
    %v561 = vld [vmem:[%s560] sm:$0x3]
    %562 = vmatprep.subr.mxu0 0.0
    %563 = vmatpush1.msra.mxu0 %v149
    %564 = vmatprep.subr.mxu0 0.0
    %565 = vmatpush1.msra.mxu0 %v148
    %566 = vmatprep.subr.mxu0 0.0
    %567 = vmatpush1.msra.mxu0 %v147
    %568 = vmatprep.subr.mxu0 0.0
    %569 = vmatpush1.msra.mxu0 %v146
    %570 = vmatprep.subr.mxu0 0.0
    %571 = vmatpush1.msra.mxu0 %v145
    %572 = vmatprep.subr.mxu0 0.0
    %573 = vmatpush1.msra.mxu0 %v144
    %574 = vmatprep.subr.mxu0 0.0
    %575 = vmatpush1.msra.mxu0 %v143
    %576 = vmatprep.subr.mxu0 0.0
    %577 = vmatpush1.msra.mxu0 %v142
    %578 = vmatprep.subr.mxu0 0.0
    %579 = vmatpush1.msra.mxu0 %v141
    %580 = vmatprep.subr.mxu0 0.0
    %581 = vmatpush1.msra.mxu0 %v140
    %582 = vmatprep.subr.mxu0 0.0
    %583 = vmatpush1.msra.mxu0 %v139
    %584 = vmatprep.subr.mxu0 0.0
    %585 = vmatpush1.msra.mxu0 %v138
    %586 = vmatprep.subr.mxu0 0.0
    %587 = vmatpush1.msra.mxu0 %v137
    %588 = vmatprep.subr.mxu0 0.0
    %589 = vmatpush1.msra.mxu0 %v136
    %590 = vmatprep.subr.mxu0 0.0
    %591 = vmatpush1.msra.mxu0 %v135
    %592 = vmatprep.subr.mxu0 0.0
    %593 = vmatpush1.msra.mxu0 %v134
    %594 = vmatprep.subr.mxu0 0.0
    %595 = vmatpush2.msra.mxu0 0.0
    %596 = vmatprep.subr.mxu0 0.0
    %597 = vmatpush2.msra.mxu0 0.0
    %598 = vmatprep.subr.mxu0 0.0
    %599 = vmatpush2.msra.mxu0 0.0
    %600 = vmatprep.subr.mxu0 0.0
    %601 = vmatpush2.msra.mxu0 0.0
    %602 = vmatprep.subr.mxu0 0.0
    %603 = vmatpush2.msra.mxu0 0.0
    %604 = vmatprep.subr.mxu0 0.0
    %605 = vmatpush2.msra.mxu0 0.0
    %606 = vmatprep.subr.mxu0 0.0
    %607 = vmatpush2.msra.mxu0 0.0
    %608 = vmatprep.subr.mxu0 0.0
    %609 = vmatpush2.msra.mxu0 0.0
    %610 = vmatprep.subr.mxu0 0.0
    %611 = vmatpush2.msra.mxu0 0.0
    %612 = vmatprep.subr.mxu0 0.0
    %613 = vmatpush2.msra.mxu0 0.0
    %614 = vmatprep.subr.mxu0 0.0
    %615 = vmatpush2.msra.mxu0 0.0
    %616 = vmatprep.subr.mxu0 0.0
    %617 = vmatpush2.msra.mxu0 0.0
    %618 = vmatprep.subr.mxu0 0.0
    %619 = vmatpush2.msra.mxu0 0.0
    %620 = vmatprep.subr.mxu0 0.0
    %621 = vmatpush2.msra.mxu0 0.0
    %622 = vmatprep.subr.mxu0 0.0
    %623 = vmatpush2.msra.mxu0 0.0
    %624 = vmatprep.subr.mxu0 0.0
    %625 = vmatpush2.msra.mxu0 0.0
    %626 = vmatprep.mubr.f32.mxu0 0.0
    %627 = vmatmul.mubr.f32.gmra.mxu0 %v558
    %v628 = vpop.f32.mrf.mxu0
    %v629 = vadd.f32 0.0, %v628
    %v630 = vpop.f32.mrf.mxu0
    %631 = vdwg.mxu0
    %v632 = vadd.f32 %v561, %v629
    %v633 = vtanh.pop %v632
    %634 = vst [vmem:[%s560] sm:$0x3] %v633
    %s635 = scalar_lea.vmem [#allocation2], 8
    %v636 = vld [vmem:[%s635] sm:$0x3]
    %637 = vmatprep.subr.mxu0 0.0
    %638 = vmatpush1.msra.mxu0 %v149
    %639 = vmatprep.subr.mxu0 0.0
    %640 = vmatpush1.msra.mxu0 %v148
    %641 = vmatprep.subr.mxu0 0.0
    %642 = vmatpush1.msra.mxu0 %v147
    %643 = vmatprep.subr.mxu0 0.0
    %644 = vmatpush1.msra.mxu0 %v146
    %645 = vmatprep.subr.mxu0 0.0
    %646 = vmatpush1.msra.mxu0 %v145
    %647 = vmatprep.subr.mxu0 0.0
    %648 = vmatpush1.msra.mxu0 %v144
    %649 = vmatprep.subr.mxu0 0.0
    %650 = vmatpush1.msra.mxu0 %v143
    %651 = vmatprep.subr.mxu0 0.0
    %652 = vmatpush1.msra.mxu0 %v142
    %653 = vmatprep.subr.mxu0 0.0
    %654 = vmatpush1.msra.mxu0 %v141
    %655 = vmatprep.subr.mxu0 0.0
    %656 = vmatpush1.msra.mxu0 %v140
    %657 = vmatprep.subr.mxu0 0.0
    %658 = vmatpush1.msra.mxu0 %v139
    %659 = vmatprep.subr.mxu0 0.0
    %660 = vmatpush1.msra.mxu0 %v138
    %661 = vmatprep.subr.mxu0 0.0
    %662 = vmatpush1.msra.mxu0 %v137
    %663 = vmatprep.subr.mxu0 0.0
    %664 = vmatpush1.msra.mxu0 %v136
    %665 = vmatprep.subr.mxu0 0.0
    %666 = vmatpush1.msra.mxu0 %v135
    %667 = vmatprep.subr.mxu0 0.0
    %668 = vmatpush1.msra.mxu0 %v134
    %669 = vmatprep.subr.mxu0 0.0
    %670 = vmatpush2.msra.mxu0 0.0
    %671 = vmatprep.subr.mxu0 0.0
    %672 = vmatpush2.msra.mxu0 0.0
    %673 = vmatprep.subr.mxu0 0.0
    %674 = vmatpush2.msra.mxu0 0.0
    %675 = vmatprep.subr.mxu0 0.0
    %676 = vmatpush2.msra.mxu0 0.0
    %677 = vmatprep.subr.mxu0 0.0
    %678 = vmatpush2.msra.mxu0 0.0
    %679 = vmatprep.subr.mxu0 0.0
    %680 = vmatpush2.msra.mxu0 0.0
    %681 = vmatprep.subr.mxu0 0.0
    %682 = vmatpush2.msra.mxu0 0.0
    %683 = vmatprep.subr.mxu0 0.0
    %684 = vmatpush2.msra.mxu0 0.0
    %685 = vmatprep.subr.mxu0 0.0
    %686 = vmatpush2.msra.mxu0 0.0
    %687 = vmatprep.subr.mxu0 0.0
    %688 = vmatpush2.msra.mxu0 0.0
    %689 = vmatprep.subr.mxu0 0.0
    %690 = vmatpush2.msra.mxu0 0.0
    %691 = vmatprep.subr.mxu0 0.0
    %692 = vmatpush2.msra.mxu0 0.0
    %693 = vmatprep.subr.mxu0 0.0
    %694 = vmatpush2.msra.mxu0 0.0
    %695 = vmatprep.subr.mxu0 0.0
    %696 = vmatpush2.msra.mxu0 0.0
    %697 = vmatprep.subr.mxu0 0.0
    %698 = vmatpush2.msra.mxu0 0.0
    %699 = vmatprep.subr.mxu0 0.0
    %700 = vmatpush2.msra.mxu0 0.0
    %701 = vmatprep.mubr.f32.mxu0 0.0
    %702 = vmatmul.mubr.f32.gmra.mxu0 %v633
    %v703 = vpop.f32.mrf.mxu0
    %v704 = vadd.f32 0.0, %v703
    %v705 = vpop.f32.mrf.mxu0
    %706 = vdwg.mxu0
    %v707 = vadd.f32 %v636, %v704
    %v708 = vtanh.pop %v707
    %709 = vst [vmem:[%s635] sm:$0x3] %v708
    %s710 = scalar_lea.vmem [#allocation2], 10
    %v711 = vld [vmem:[%s710] sm:$0x3]
    %712 = vmatprep.subr.mxu0 0.0
    %713 = vmatpush1.msra.mxu0 %v149
    %714 = vmatprep.subr.mxu0 0.0
    %715 = vmatpush1.msra.mxu0 %v148
    %716 = vmatprep.subr.mxu0 0.0
    %717 = vmatpush1.msra.mxu0 %v147
    %718 = vmatprep.subr.mxu0 0.0
    %719 = vmatpush1.msra.mxu0 %v146
    %720 = vmatprep.subr.mxu0 0.0
    %721 = vmatpush1.msra.mxu0 %v145
    %722 = vmatprep.subr.mxu0 0.0
    %723 = vmatpush1.msra.mxu0 %v144
    %724 = vmatprep.subr.mxu0 0.0
    %725 = vmatpush1.msra.mxu0 %v143
    %726 = vmatprep.subr.mxu0 0.0
    %727 = vmatpush1.msra.mxu0 %v142
    %728 = vmatprep.subr.mxu0 0.0
    %729 = vmatpush1.msra.mxu0 %v141
    %730 = vmatprep.subr.mxu0 0.0
    %731 = vmatpush1.msra.mxu0 %v140
    %732 = vmatprep.subr.mxu0 0.0
    %733 = vmatpush1.msra.mxu0 %v139
    %734 = vmatprep.subr.mxu0 0.0
    %735 = vmatpush1.msra.mxu0 %v138
    %736 = vmatprep.subr.mxu0 0.0
    %737 = vmatpush1.msra.mxu0 %v137
    %738 = vmatprep.subr.mxu0 0.0
    %739 = vmatpush1.msra.mxu0 %v136
    %740 = vmatprep.subr.mxu0 0.0
    %741 = vmatpush1.msra.mxu0 %v135
    %742 = vmatprep.subr.mxu0 0.0
    %743 = vmatpush1.msra.mxu0 %v134
    %744 = vmatprep.subr.mxu0 0.0
    %745 = vmatpush2.msra.mxu0 0.0
    %746 = vmatprep.subr.mxu0 0.0
    %747 = vmatpush2.msra.mxu0 0.0
    %748 = vmatprep.subr.mxu0 0.0
    %749 = vmatpush2.msra.mxu0 0.0
    %750 = vmatprep.subr.mxu0 0.0
    %751 = vmatpush2.msra.mxu0 0.0
    %752 = vmatprep.subr.mxu0 0.0
    %753 = vmatpush2.msra.mxu0 0.0
    %754 = vmatprep.subr.mxu0 0.0
    %755 = vmatpush2.msra.mxu0 0.0
    %756 = vmatprep.subr.mxu0 0.0
    %757 = vmatpush2.msra.mxu0 0.0
    %758 = vmatprep.subr.mxu0 0.0
    %759 = vmatpush2.msra.mxu0 0.0
    %760 = vmatprep.subr.mxu0 0.0
    %761 = vmatpush2.msra.mxu0 0.0
    %762 = vmatprep.subr.mxu0 0.0
    %763 = vmatpush2.msra.mxu0 0.0
    %764 = vmatprep.subr.mxu0 0.0
    %765 = vmatpush2.msra.mxu0 0.0
    %766 = vmatprep.subr.mxu0 0.0
    %767 = vmatpush2.msra.mxu0 0.0
    %768 = vmatprep.subr.mxu0 0.0
    %769 = vmatpush2.msra.mxu0 0.0
    %770 = vmatprep.subr.mxu0 0.0
    %771 = vmatpush2.msra.mxu0 0.0
    %772 = vmatprep.subr.mxu0 0.0
    %773 = vmatpush2.msra.mxu0 0.0
    %774 = vmatprep.subr.mxu0 0.0
    %775 = vmatpush2.msra.mxu0 0.0
    %776 = vmatprep.mubr.f32.mxu0 0.0
    %777 = vmatmul.mubr.f32.gmra.mxu0 %v708
    %v778 = vpop.f32.mrf.mxu0
    %v779 = vadd.f32 0.0, %v778
    %v780 = vpop.f32.mrf.mxu0
    %781 = vdwg.mxu0
    %v782 = vadd.f32 %v711, %v779
    %v783 = vtanh.pop %v782
    %784 = vst [vmem:[%s710] sm:$0x3] %v783
    %s785 = scalar_lea.vmem [#allocation2], 12
    %v786 = vld [vmem:[%s785] sm:$0x3]
    %787 = vmatprep.subr.mxu0 0.0
    %788 = vmatpush1.msra.mxu0 %v149
    %789 = vmatprep.subr.mxu0 0.0
    %790 = vmatpush1.msra.mxu0 %v148
    %791 = vmatprep.subr.mxu0 0.0
    %792 = vmatpush1.msra.mxu0 %v147
    %793 = vmatprep.subr.mxu0 0.0
    %794 = vmatpush1.msra.mxu0 %v146
    %795 = vmatprep.subr.mxu0 0.0
    %796 = vmatpush1.msra.mxu0 %v145
    %797 = vmatprep.subr.mxu0 0.0
    %798 = vmatpush1.msra.mxu0 %v144
    %799 = vmatprep.subr.mxu0 0.0
    %800 = vmatpush1.msra.mxu0 %v143
    %801 = vmatprep.subr.mxu0 0.0
    %802 = vmatpush1.msra.mxu0 %v142
    %803 = vmatprep.subr.mxu0 0.0
    %804 = vmatpush1.msra.mxu0 %v141
    %805 = vmatprep.subr.mxu0 0.0
    %806 = vmatpush1.msra.mxu0 %v140
    %807 = vmatprep.subr.mxu0 0.0
    %808 = vmatpush1.msra.mxu0 %v139
    %809 = vmatprep.subr.mxu0 0.0
    %810 = vmatpush1.msra.mxu0 %v138
    %811 = vmatprep.subr.mxu0 0.0
    %812 = vmatpush1.msra.mxu0 %v137
    %813 = vmatprep.subr.mxu0 0.0
    %814 = vmatpush1.msra.mxu0 %v136
    %815 = vmatprep.subr.mxu0 0.0
    %816 = vmatpush1.msra.mxu0 %v135
    %817 = vmatprep.subr.mxu0 0.0
    %818 = vmatpush1.msra.mxu0 %v134
    %819 = vmatprep.subr.mxu0 0.0
    %820 = vmatpush2.msra.mxu0 0.0
    %821 = vmatprep.subr.mxu0 0.0
    %822 = vmatpush2.msra.mxu0 0.0
    %823 = vmatprep.subr.mxu0 0.0
    %824 = vmatpush2.msra.mxu0 0.0
    %825 = vmatprep.subr.mxu0 0.0
    %826 = vmatpush2.msra.mxu0 0.0
    %827 = vmatprep.subr.mxu0 0.0
    %828 = vmatpush2.msra.mxu0 0.0
    %829 = vmatprep.subr.mxu0 0.0
    %830 = vmatpush2.msra.mxu0 0.0
    %831 = vmatprep.subr.mxu0 0.0
    %832 = vmatpush2.msra.mxu0 0.0
    %833 = vmatprep.subr.mxu0 0.0
    %834 = vmatpush2.msra.mxu0 0.0
    %835 = vmatprep.subr.mxu0 0.0
    %836 = vmatpush2.msra.mxu0 0.0
    %837 = vmatprep.subr.mxu0 0.0
    %838 = vmatpush2.msra.mxu0 0.0
    %839 = vmatprep.subr.mxu0 0.0
    %840 = vmatpush2.msra.mxu0 0.0
    %841 = vmatprep.subr.mxu0 0.0
    %842 = vmatpush2.msra.mxu0 0.0
    %843 = vmatprep.subr.mxu0 0.0
    %844 = vmatpush2.msra.mxu0 0.0
    %845 = vmatprep.subr.mxu0 0.0
    %846 = vmatpush2.msra.mxu0 0.0
    %847 = vmatprep.subr.mxu0 0.0
    %848 = vmatpush2.msra.mxu0 0.0
    %849 = vmatprep.subr.mxu0 0.0
    %850 = vmatpush2.msra.mxu0 0.0
    %851 = vmatprep.mubr.f32.mxu0 0.0
    %852 = vmatmul.mubr.f32.gmra.mxu0 %v783
    %v853 = vpop.f32.mrf.mxu0
    %v854 = vadd.f32 0.0, %v853
    %v855 = vpop.f32.mrf.mxu0
    %856 = vdwg.mxu0
    %v857 = vadd.f32 %v786, %v854
    %v858 = vtanh.pop %v857
    %859 = vst [vmem:[%s785] sm:$0x3] %v858
    %s860 = scalar_lea.vmem [#allocation2], 14
    %v861 = vld [vmem:[%s860] sm:$0x3]
    %862 = vmatprep.subr.mxu0 0.0
    %863 = vmatpush1.msra.mxu0 %v149
    %864 = vmatprep.subr.mxu0 0.0
    %865 = vmatpush1.msra.mxu0 %v148
    %866 = vmatprep.subr.mxu0 0.0
    %867 = vmatpush1.msra.mxu0 %v147
    %868 = vmatprep.subr.mxu0 0.0
    %869 = vmatpush1.msra.mxu0 %v146
    %870 = vmatprep.subr.mxu0 0.0
    %871 = vmatpush1.msra.mxu0 %v145
    %872 = vmatprep.subr.mxu0 0.0
    %873 = vmatpush1.msra.mxu0 %v144
    %874 = vmatprep.subr.mxu0 0.0
    %875 = vmatpush1.msra.mxu0 %v143
    %876 = vmatprep.subr.mxu0 0.0
    %877 = vmatpush1.msra.mxu0 %v142
    %878 = vmatprep.subr.mxu0 0.0
    %879 = vmatpush1.msra.mxu0 %v141
    %880 = vmatprep.subr.mxu0 0.0
    %881 = vmatpush1.msra.mxu0 %v140
    %882 = vmatprep.subr.mxu0 0.0
    %883 = vmatpush1.msra.mxu0 %v139
    %884 = vmatprep.subr.mxu0 0.0
    %885 = vmatpush1.msra.mxu0 %v138
    %886 = vmatprep.subr.mxu0 0.0
    %887 = vmatpush1.msra.mxu0 %v137
    %888 = vmatprep.subr.mxu0 0.0
    %889 = vmatpush1.msra.mxu0 %v136
    %890 = vmatprep.subr.mxu0 0.0
    %891 = vmatpush1.msra.mxu0 %v135
    %892 = vmatprep.subr.mxu0 0.0
    %893 = vmatpush1.msra.mxu0 %v134
    %894 = vmatprep.subr.mxu0 0.0
    %895 = vmatpush2.msra.mxu0 0.0
    %896 = vmatprep.subr.mxu0 0.0
    %897 = vmatpush2.msra.mxu0 0.0
    %898 = vmatprep.subr.mxu0 0.0
    %899 = vmatpush2.msra.mxu0 0.0
    %900 = vmatprep.subr.mxu0 0.0
    %901 = vmatpush2.msra.mxu0 0.0
    %902 = vmatprep.subr.mxu0 0.0
    %903 = vmatpush2.msra.mxu0 0.0
    %904 = vmatprep.subr.mxu0 0.0
    %905 = vmatpush2.msra.mxu0 0.0
    %906 = vmatprep.subr.mxu0 0.0
    %907 = vmatpush2.msra.mxu0 0.0
    %908 = vmatprep.subr.mxu0 0.0
    %909 = vmatpush2.msra.mxu0 0.0
    %910 = vmatprep.subr.mxu0 0.0
    %911 = vmatpush2.msra.mxu0 0.0
    %912 = vmatprep.subr.mxu0 0.0
    %913 = vmatpush2.msra.mxu0 0.0
    %914 = vmatprep.subr.mxu0 0.0
    %915 = vmatpush2.msra.mxu0 0.0
    %916 = vmatprep.subr.mxu0 0.0
    %917 = vmatpush2.msra.mxu0 0.0
    %918 = vmatprep.subr.mxu0 0.0
    %919 = vmatpush2.msra.mxu0 0.0
    %920 = vmatprep.subr.mxu0 0.0
    %921 = vmatpush2.msra.mxu0 0.0
    %922 = vmatprep.subr.mxu0 0.0
    %923 = vmatpush2.msra.mxu0 0.0
    %924 = vmatprep.subr.mxu0 0.0
    %925 = vmatpush2.msra.mxu0 0.0
    %926 = vmatprep.mubr.f32.mxu0 0.0
    %927 = vmatmul.mubr.f32.gmra.mxu0 %v858
    %v928 = vpop.f32.mrf.mxu0
    %v929 = vadd.f32 0.0, %v928
    %v930 = vpop.f32.mrf.mxu0
    %931 = vdwg.mxu0
    %v932 = vadd.f32 %v861, %v929
    %v933 = vtanh.pop %v932
    %934 = vst [vmem:[%s860] sm:$0x3] %v933
    %935 = vst [vmem:[#allocation15] sm:$0x3] %v933
    %v936 = vld [vmem:[#allocation9] sm:$0xff]
    %v937 = vld [vmem:[#allocation9 + $0x8] sm:$0xff]
    %v938 = vld [vmem:[#allocation9 + $0x10] sm:$0xff]
    %v939 = vld [vmem:[#allocation9 + $0x18] sm:$0xff]
    %v940 = vld [vmem:[#allocation9 + $0x20] sm:$0xff]
    %v941 = vld [vmem:[#allocation9 + $0x28] sm:$0xff]
    %v942 = vld [vmem:[#allocation9 + $0x30] sm:$0xff]
    %v943 = vld [vmem:[#allocation9 + $0x38] sm:$0xff]
    %v944 = vld [vmem:[#allocation9 + $0x40] sm:$0xff]
    %v945 = vld [vmem:[#allocation9 + $0x48] sm:$0xff]
    %v946 = vld [vmem:[#allocation9 + $0x50] sm:$0xff]
    %v947 = vld [vmem:[#allocation9 + $0x58] sm:$0xff]
    %v948 = vld [vmem:[#allocation9 + $0x60] sm:$0xff]
    %v949 = vld [vmem:[#allocation9 + $0x68] sm:$0xff]
    %v950 = vld [vmem:[#allocation9 + $0x70] sm:$0xff]
    %v951 = vld [vmem:[#allocation9 + $0x78] sm:$0xff]
    %v952 = vld [vmem:[#allocation11] sm:$0xff]
    %v953 = vld [vmem:[#allocation11 + $0x8] sm:$0xff]
    %v954 = vld [vmem:[#allocation11 + $0x10] sm:$0xff]
    %v955 = vld [vmem:[#allocation11 + $0x18] sm:$0xff]
    %v956 = vld [vmem:[#allocation11 + $0x20] sm:$0xff]
    %v957 = vld [vmem:[#allocation11 + $0x28] sm:$0xff]
    %v958 = vld [vmem:[#allocation11 + $0x30] sm:$0xff]
    %v959 = vld [vmem:[#allocation11 + $0x38] sm:$0xff]
    %v960 = vld [vmem:[#allocation11 + $0x40] sm:$0xff]
    %v961 = vld [vmem:[#allocation11 + $0x48] sm:$0xff]
    %v962 = vld [vmem:[#allocation11 + $0x50] sm:$0xff]
    %v963 = vld [vmem:[#allocation11 + $0x58] sm:$0xff]
    %v964 = vld [vmem:[#allocation11 + $0x60] sm:$0xff]
    %v965 = vld [vmem:[#allocation11 + $0x68] sm:$0xff]
    %v966 = vld [vmem:[#allocation11 + $0x70] sm:$0xff]
    %v967 = vld [vmem:[#allocation11 + $0x78] sm:$0xff]
    %v968 = vld [vmem:[%s6] sm:$0x1]
    %v969 = vld [vmem:[#allocation2] sm:$0x3]
    %v970 = vld [vmem:[#allocation2 + $0x2] sm:$0x3]
    %v971 = vld [vmem:[#allocation2 + $0x4] sm:$0x3]
    %v972 = vld [vmem:[#allocation2 + $0x6] sm:$0x3]
    %v973 = vld [vmem:[#allocation2 + $0x8] sm:$0x3]
    %v974 = vld [vmem:[#allocation2 + $0xa] sm:$0x3]
    %v975 = vld [vmem:[#allocation2 + $0xc] sm:$0x3]
    %v976 = vld [vmem:[#allocation2 + $0xe] sm:$0x3]
    %v978 = vlaneseq
    %v979 = vshrl.u32 %v978, 7
    %v980 = vsub.s32 0, %v979
    %v981 = vrot.slane %v968, %v980
    %v991 = vcombine.low %v969, %v970
    %v992 = vcombine.low %v971, %v972
    %v994 = vunpack.c.l.s4 1983009808
    %v995 = vunpack.c.0.s8 %v994
    %v996 = vlaneseq
    %v997 = vshrl.u32 %v996, 7
    %v998 = vsub.s32 %v995, %v997
    %v999 = vrot.slane %v991, %v998
    %v1001 = vunpack.c.l.s4 1983009808
    %v1002 = vunpack.c.0.s8 %v1001
    %v1003 = vlaneseq
    %v1004 = vshrl.u32 %v1003, 7
    %v1005 = vsub.s32 %v1002, %v1004
    %v1006 = vrot.slane %v992, %v1005
    %v1007 = vcombine.low %v999, %v1006
    %v1008 = vcombine.low %v973, %v974
    %v1009 = vcombine.low %v975, %v976
    %v1011 = vunpack.c.l.s4 1983009808
    %v1012 = vunpack.c.0.s8 %v1011
    %v1013 = vlaneseq
    %v1014 = vshrl.u32 %v1013, 7
    %v1015 = vsub.s32 %v1012, %v1014
    %v1016 = vrot.slane %v1008, %v1015
    %v1018 = vunpack.c.l.s4 1983009808
    %v1019 = vunpack.c.0.s8 %v1018
    %v1020 = vlaneseq
    %v1021 = vshrl.u32 %v1020, 7
    %v1022 = vsub.s32 %v1019, %v1021
    %v1023 = vrot.slane %v1009, %v1022
    %v1024 = vcombine.low %v1016, %v1023
    %1027 = vmatprep.subr.mxu0 0.0
    %1028 = vmatpush1.msra.mxu0 %v951
    %1029 = vmatprep.subr.mxu0 0.0
    %1030 = vmatpush1.msra.mxu0 %v950
    %1031 = vmatprep.subr.mxu0 0.0
    %1032 = vmatpush1.msra.mxu0 %v949
    %1033 = vmatprep.subr.mxu0 0.0
    %1034 = vmatpush1.msra.mxu0 %v948
    %1035 = vmatprep.subr.mxu0 0.0
    %1036 = vmatpush1.msra.mxu0 %v947
    %1037 = vmatprep.subr.mxu0 0.0
    %1038 = vmatpush1.msra.mxu0 %v946
    %1039 = vmatprep.subr.mxu0 0.0
    %1040 = vmatpush1.msra.mxu0 %v945
    %1041 = vmatprep.subr.mxu0 0.0
    %1042 = vmatpush1.msra.mxu0 %v944
    %1043 = vmatprep.subr.mxu0 0.0
    %1044 = vmatpush1.msra.mxu0 %v943
    %1045 = vmatprep.subr.mxu0 0.0
    %1046 = vmatpush1.msra.mxu0 %v942
    %1047 = vmatprep.subr.mxu0 0.0
    %1048 = vmatpush1.msra.mxu0 %v941
    %1049 = vmatprep.subr.mxu0 0.0
    %1050 = vmatpush1.msra.mxu0 %v940
    %1051 = vmatprep.subr.mxu0 0.0
    %1052 = vmatpush1.msra.mxu0 %v939
    %1053 = vmatprep.subr.mxu0 0.0
    %1054 = vmatpush1.msra.mxu0 %v938
    %1055 = vmatprep.subr.mxu0 0.0
    %1056 = vmatpush1.msra.mxu0 %v937
    %1057 = vmatprep.subr.mxu0 0.0
    %1058 = vmatpush1.msra.mxu0 %v936
    %1059 = vmatprep.subr.mxu0 0.0
    %1060 = vmatpush2.msra.mxu0 0.0
    %1061 = vmatprep.subr.mxu0 0.0
    %1062 = vmatpush2.msra.mxu0 0.0
    %1063 = vmatprep.subr.mxu0 0.0
    %1064 = vmatpush2.msra.mxu0 0.0
    %1065 = vmatprep.subr.mxu0 0.0
    %1066 = vmatpush2.msra.mxu0 0.0
    %1067 = vmatprep.subr.mxu0 0.0
    %1068 = vmatpush2.msra.mxu0 0.0
    %1069 = vmatprep.subr.mxu0 0.0
    %1070 = vmatpush2.msra.mxu0 0.0
    %1071 = vmatprep.subr.mxu0 0.0
    %1072 = vmatpush2.msra.mxu0 0.0
    %1073 = vmatprep.subr.mxu0 0.0
    %1074 = vmatpush2.msra.mxu0 0.0
    %1075 = vmatprep.subr.mxu0 0.0
    %1076 = vmatpush2.msra.mxu0 0.0
    %1077 = vmatprep.subr.mxu0 0.0
    %1078 = vmatpush2.msra.mxu0 0.0
    %1079 = vmatprep.subr.mxu0 0.0
    %1080 = vmatpush2.msra.mxu0 0.0
    %1081 = vmatprep.subr.mxu0 0.0
    %1082 = vmatpush2.msra.mxu0 0.0
    %1083 = vmatprep.subr.mxu0 0.0
    %1084 = vmatpush2.msra.mxu0 0.0
    %1085 = vmatprep.subr.mxu0 0.0
    %1086 = vmatpush2.msra.mxu0 0.0
    %1087 = vmatprep.subr.mxu0 0.0
    %1088 = vmatpush2.msra.mxu0 0.0
    %1089 = vmatprep.subr.mxu0 0.0
    %1090 = vmatpush2.msra.mxu0 0.0
    %1091 = vmatprep.mubr.f32.mxu0 0.0
    %1092 = vmatmul.mubr.f32.gmra.mxu0 %v1007
    %v1093 = vpop.f32.mrf.mxu0
    %v1094 = vadd.f32 %v981, %v1093
    %v1095 = vpop.f32.mrf.mxu0
    %1096 = vmatprep.mubr.f32.mxu0 0.0
    %1097 = vmatmul.mubr.f32.gmra.mxu0 %v1024
    %v1098 = vpop.f32.mrf.mxu0
    %v1099 = vadd.f32 %v981, %v1098
    %v1100 = vpop.f32.mrf.mxu0
    %1101 = vdwg.mxu0
    %v1104 = vcombine.high %v1094, %v1094
    %v1106 = vunpack.c.l.s4 1983009808
    %v1107 = vunpack.c.0.s8 %v1106
    %v1108 = vlaneseq
    %v1109 = vshrl.u32 %v1108, 7
    %v1110 = vsub.s32 %v1107, %v1109
    %v1111 = vrot.slane %v1094, %v1110
    %v1113 = vunpack.c.l.s4 1983009808
    %v1114 = vunpack.c.0.s8 %v1113
    %v1115 = vlaneseq
    %v1116 = vshrl.u32 %v1115, 7
    %v1117 = vsub.s32 %v1114, %v1116
    %v1118 = vrot.slane %v1104, %v1117
    %v1119 = vcombine.high %v1111, %v1111
    %v1120 = vcombine.high %v1118, %v1118
    %v1121 = vcombine.high %v1099, %v1099
    %v1123 = vunpack.c.l.s4 1983009808
    %v1124 = vunpack.c.0.s8 %v1123
    %v1125 = vlaneseq
    %v1126 = vshrl.u32 %v1125, 7
    %v1127 = vsub.s32 %v1124, %v1126
    %v1128 = vrot.slane %v1099, %v1127
    %v1130 = vunpack.c.l.s4 1983009808
    %v1131 = vunpack.c.0.s8 %v1130
    %v1132 = vlaneseq
    %v1133 = vshrl.u32 %v1132, 7
    %v1134 = vsub.s32 %v1131, %v1133
    %v1135 = vrot.slane %v1121, %v1134
    %v1136 = vcombine.high %v1128, %v1128
    %v1137 = vcombine.high %v1135, %v1135
    %1146 = vst [vmem:[#allocation2] sm:$0x3] %v1111
    %1147 = vst [vmem:[#allocation2 + $0x2] sm:$0x3] %v1119
    %1148 = vst [vmem:[#allocation2 + $0x4] sm:$0x3] %v1118
    %1149 = vst [vmem:[#allocation2 + $0x6] sm:$0x3] %v1120
    %1150 = vst [vmem:[#allocation2 + $0x8] sm:$0x3] %v1128
    %1151 = vst [vmem:[#allocation2 + $0xa] sm:$0x3] %v1136
    %1152 = vst [vmem:[#allocation2 + $0xc] sm:$0x3] %v1135
    %1153 = vst [vmem:[#allocation2 + $0xe] sm:$0x3] %v1137
    %v1154 = vld [vmem:[#allocation2] sm:$0x3]
    %1155 = vmatprep.subr.mxu0 0.0
    %1156 = vmatpush1.msra.mxu0 %v967
    %1157 = vmatprep.subr.mxu0 0.0
    %1158 = vmatpush1.msra.mxu0 %v966
    %1159 = vmatprep.subr.mxu0 0.0
    %1160 = vmatpush1.msra.mxu0 %v965
    %1161 = vmatprep.subr.mxu0 0.0
    %1162 = vmatpush1.msra.mxu0 %v964
    %1163 = vmatprep.subr.mxu0 0.0
    %1164 = vmatpush1.msra.mxu0 %v963
    %1165 = vmatprep.subr.mxu0 0.0
    %1166 = vmatpush1.msra.mxu0 %v962
    %1167 = vmatprep.subr.mxu0 0.0
    %1168 = vmatpush1.msra.mxu0 %v961
    %1169 = vmatprep.subr.mxu0 0.0
    %1170 = vmatpush1.msra.mxu0 %v960
    %1171 = vmatprep.subr.mxu0 0.0
    %1172 = vmatpush1.msra.mxu0 %v959
    %1173 = vmatprep.subr.mxu0 0.0
    %1174 = vmatpush1.msra.mxu0 %v958
    %1175 = vmatprep.subr.mxu0 0.0
    %1176 = vmatpush1.msra.mxu0 %v957
    %1177 = vmatprep.subr.mxu0 0.0
    %1178 = vmatpush1.msra.mxu0 %v956
    %1179 = vmatprep.subr.mxu0 0.0
    %1180 = vmatpush1.msra.mxu0 %v955
    %1181 = vmatprep.subr.mxu0 0.0
    %1182 = vmatpush1.msra.mxu0 %v954
    %1183 = vmatprep.subr.mxu0 0.0
    %1184 = vmatpush1.msra.mxu0 %v953
    %1185 = vmatprep.subr.mxu0 0.0
    %1186 = vmatpush1.msra.mxu0 %v952
    %1187 = vmatprep.subr.mxu0 0.0
    %1188 = vmatpush2.msra.mxu0 0.0
    %1189 = vmatprep.subr.mxu0 0.0
    %1190 = vmatpush2.msra.mxu0 0.0
    %1191 = vmatprep.subr.mxu0 0.0
    %1192 = vmatpush2.msra.mxu0 0.0
    %1193 = vmatprep.subr.mxu0 0.0
    %1194 = vmatpush2.msra.mxu0 0.0
    %1195 = vmatprep.subr.mxu0 0.0
    %1196 = vmatpush2.msra.mxu0 0.0
    %1197 = vmatprep.subr.mxu0 0.0
    %1198 = vmatpush2.msra.mxu0 0.0
    %1199 = vmatprep.subr.mxu0 0.0
    %1200 = vmatpush2.msra.mxu0 0.0
    %1201 = vmatprep.subr.mxu0 0.0
    %1202 = vmatpush2.msra.mxu0 0.0
    %1203 = vmatprep.subr.mxu0 0.0
    %1204 = vmatpush2.msra.mxu0 0.0
    %1205 = vmatprep.subr.mxu0 0.0
    %1206 = vmatpush2.msra.mxu0 0.0
    %1207 = vmatprep.subr.mxu0 0.0
    %1208 = vmatpush2.msra.mxu0 0.0
    %1209 = vmatprep.subr.mxu0 0.0
    %1210 = vmatpush2.msra.mxu0 0.0
    %1211 = vmatprep.subr.mxu0 0.0
    %1212 = vmatpush2.msra.mxu0 0.0
    %1213 = vmatprep.subr.mxu0 0.0
    %1214 = vmatpush2.msra.mxu0 0.0
    %1215 = vmatprep.subr.mxu0 0.0
    %1216 = vmatpush2.msra.mxu0 0.0
    %1217 = vmatprep.subr.mxu0 0.0
    %1218 = vmatpush2.msra.mxu0 0.0
    %1219 = vmatprep.mubr.f32.mxu0 0.0
    %1220 = vmatmul.mubr.f32.gmra.mxu0 0.0
    %v1221 = vpop.f32.mrf.mxu0
    %v1222 = vadd.f32 0.0, %v1221
    %v1223 = vpop.f32.mrf.mxu0
    %1224 = vdwg.mxu0
    %v1225 = vadd.f32 %v1154, %v1222
    %v1226 = vtanh.pop %v1225
    %1227 = vst [vmem:[#allocation2] sm:$0x3] %v1226
    %v1228 = vld [vmem:[%s410] sm:$0x3]
    %1229 = vmatprep.subr.mxu0 0.0
    %1230 = vmatpush1.msra.mxu0 %v967
    %1231 = vmatprep.subr.mxu0 0.0
    %1232 = vmatpush1.msra.mxu0 %v966
    %1233 = vmatprep.subr.mxu0 0.0
    %1234 = vmatpush1.msra.mxu0 %v965
    %1235 = vmatprep.subr.mxu0 0.0
    %1236 = vmatpush1.msra.mxu0 %v964
    %1237 = vmatprep.subr.mxu0 0.0
    %1238 = vmatpush1.msra.mxu0 %v963
    %1239 = vmatprep.subr.mxu0 0.0
    %1240 = vmatpush1.msra.mxu0 %v962
    %1241 = vmatprep.subr.mxu0 0.0
    %1242 = vmatpush1.msra.mxu0 %v961
    %1243 = vmatprep.subr.mxu0 0.0
    %1244 = vmatpush1.msra.mxu0 %v960
    %1245 = vmatprep.subr.mxu0 0.0
    %1246 = vmatpush1.msra.mxu0 %v959
    %1247 = vmatprep.subr.mxu0 0.0
    %1248 = vmatpush1.msra.mxu0 %v958
    %1249 = vmatprep.subr.mxu0 0.0
    %1250 = vmatpush1.msra.mxu0 %v957
    %1251 = vmatprep.subr.mxu0 0.0
    %1252 = vmatpush1.msra.mxu0 %v956
    %1253 = vmatprep.subr.mxu0 0.0
    %1254 = vmatpush1.msra.mxu0 %v955
    %1255 = vmatprep.subr.mxu0 0.0
    %1256 = vmatpush1.msra.mxu0 %v954
    %1257 = vmatprep.subr.mxu0 0.0
    %1258 = vmatpush1.msra.mxu0 %v953
    %1259 = vmatprep.subr.mxu0 0.0
    %1260 = vmatpush1.msra.mxu0 %v952
    %1261 = vmatprep.subr.mxu0 0.0
    %1262 = vmatpush2.msra.mxu0 0.0
    %1263 = vmatprep.subr.mxu0 0.0
    %1264 = vmatpush2.msra.mxu0 0.0
    %1265 = vmatprep.subr.mxu0 0.0
    %1266 = vmatpush2.msra.mxu0 0.0
    %1267 = vmatprep.subr.mxu0 0.0
    %1268 = vmatpush2.msra.mxu0 0.0
    %1269 = vmatprep.subr.mxu0 0.0
    %1270 = vmatpush2.msra.mxu0 0.0
    %1271 = vmatprep.subr.mxu0 0.0
    %1272 = vmatpush2.msra.mxu0 0.0
    %1273 = vmatprep.subr.mxu0 0.0
    %1274 = vmatpush2.msra.mxu0 0.0
    %1275 = vmatprep.subr.mxu0 0.0
    %1276 = vmatpush2.msra.mxu0 0.0
    %1277 = vmatprep.subr.mxu0 0.0
    %1278 = vmatpush2.msra.mxu0 0.0
    %1279 = vmatprep.subr.mxu0 0.0
    %1280 = vmatpush2.msra.mxu0 0.0
    %1281 = vmatprep.subr.mxu0 0.0
    %1282 = vmatpush2.msra.mxu0 0.0
    %1283 = vmatprep.subr.mxu0 0.0
    %1284 = vmatpush2.msra.mxu0 0.0
    %1285 = vmatprep.subr.mxu0 0.0
    %1286 = vmatpush2.msra.mxu0 0.0
    %1287 = vmatprep.subr.mxu0 0.0
    %1288 = vmatpush2.msra.mxu0 0.0
    %1289 = vmatprep.subr.mxu0 0.0
    %1290 = vmatpush2.msra.mxu0 0.0
    %1291 = vmatprep.subr.mxu0 0.0
    %1292 = vmatpush2.msra.mxu0 0.0
    %1293 = vmatprep.mubr.f32.mxu0 0.0
    %1294 = vmatmul.mubr.f32.gmra.mxu0 %v1226
    %v1295 = vpop.f32.mrf.mxu0
    %v1296 = vadd.f32 0.0, %v1295
    %v1297 = vpop.f32.mrf.mxu0
    %1298 = vdwg.mxu0
    %v1299 = vadd.f32 %v1228, %v1296
    %v1300 = vtanh.pop %v1299
    %1301 = vst [vmem:[%s410] sm:$0x3] %v1300
    %v1302 = vld [vmem:[%s485] sm:$0x3]
    %1303 = vmatprep.subr.mxu0 0.0
    %1304 = vmatpush1.msra.mxu0 %v967
    %1305 = vmatprep.subr.mxu0 0.0
    %1306 = vmatpush1.msra.mxu0 %v966
    %1307 = vmatprep.subr.mxu0 0.0
    %1308 = vmatpush1.msra.mxu0 %v965
    %1309 = vmatprep.subr.mxu0 0.0
    %1310 = vmatpush1.msra.mxu0 %v964
    %1311 = vmatprep.subr.mxu0 0.0
    %1312 = vmatpush1.msra.mxu0 %v963
    %1313 = vmatprep.subr.mxu0 0.0
    %1314 = vmatpush1.msra.mxu0 %v962
    %1315 = vmatprep.subr.mxu0 0.0
    %1316 = vmatpush1.msra.mxu0 %v961
    %1317 = vmatprep.subr.mxu0 0.0
    %1318 = vmatpush1.msra.mxu0 %v960
    %1319 = vmatprep.subr.mxu0 0.0
    %1320 = vmatpush1.msra.mxu0 %v959
    %1321 = vmatprep.subr.mxu0 0.0
    %1322 = vmatpush1.msra.mxu0 %v958
    %1323 = vmatprep.subr.mxu0 0.0
    %1324 = vmatpush1.msra.mxu0 %v957
    %1325 = vmatprep.subr.mxu0 0.0
    %1326 = vmatpush1.msra.mxu0 %v956
    %1327 = vmatprep.subr.mxu0 0.0
    %1328 = vmatpush1.msra.mxu0 %v955
    %1329 = vmatprep.subr.mxu0 0.0
    %1330 = vmatpush1.msra.mxu0 %v954
    %1331 = vmatprep.subr.mxu0 0.0
    %1332 = vmatpush1.msra.mxu0 %v953
    %1333 = vmatprep.subr.mxu0 0.0
    %1334 = vmatpush1.msra.mxu0 %v952
    %1335 = vmatprep.subr.mxu0 0.0
    %1336 = vmatpush2.msra.mxu0 0.0
    %1337 = vmatprep.subr.mxu0 0.0
    %1338 = vmatpush2.msra.mxu0 0.0
    %1339 = vmatprep.subr.mxu0 0.0
    %1340 = vmatpush2.msra.mxu0 0.0
    %1341 = vmatprep.subr.mxu0 0.0
    %1342 = vmatpush2.msra.mxu0 0.0
    %1343 = vmatprep.subr.mxu0 0.0
    %1344 = vmatpush2.msra.mxu0 0.0
    %1345 = vmatprep.subr.mxu0 0.0
    %1346 = vmatpush2.msra.mxu0 0.0
    %1347 = vmatprep.subr.mxu0 0.0
    %1348 = vmatpush2.msra.mxu0 0.0
    %1349 = vmatprep.subr.mxu0 0.0
    %1350 = vmatpush2.msra.mxu0 0.0
    %1351 = vmatprep.subr.mxu0 0.0
    %1352 = vmatpush2.msra.mxu0 0.0
    %1353 = vmatprep.subr.mxu0 0.0
    %1354 = vmatpush2.msra.mxu0 0.0
    %1355 = vmatprep.subr.mxu0 0.0
    %1356 = vmatpush2.msra.mxu0 0.0
    %1357 = vmatprep.subr.mxu0 0.0
    %1358 = vmatpush2.msra.mxu0 0.0
    %1359 = vmatprep.subr.mxu0 0.0
    %1360 = vmatpush2.msra.mxu0 0.0
    %1361 = vmatprep.subr.mxu0 0.0
    %1362 = vmatpush2.msra.mxu0 0.0
    %1363 = vmatprep.subr.mxu0 0.0
    %1364 = vmatpush2.msra.mxu0 0.0
    %1365 = vmatprep.subr.mxu0 0.0
    %1366 = vmatpush2.msra.mxu0 0.0
    %1367 = vmatprep.mubr.f32.mxu0 0.0
    %1368 = vmatmul.mubr.f32.gmra.mxu0 %v1300
    %v1369 = vpop.f32.mrf.mxu0
    %v1370 = vadd.f32 0.0, %v1369
    %v1371 = vpop.f32.mrf.mxu0
    %1372 = vdwg.mxu0
    %v1373 = vadd.f32 %v1302, %v1370
    %v1374 = vtanh.pop %v1373
    %1375 = vst [vmem:[%s485] sm:$0x3] %v1374
    %v1376 = vld [vmem:[%s560] sm:$0x3]
    %1377 = vmatprep.subr.mxu0 0.0
    %1378 = vmatpush1.msra.mxu0 %v967
    %1379 = vmatprep.subr.mxu0 0.0
    %1380 = vmatpush1.msra.mxu0 %v966
    %1381 = vmatprep.subr.mxu0 0.0
    %1382 = vmatpush1.msra.mxu0 %v965
    %1383 = vmatprep.subr.mxu0 0.0
    %1384 = vmatpush1.msra.mxu0 %v964
    %1385 = vmatprep.subr.mxu0 0.0
    %1386 = vmatpush1.msra.mxu0 %v963
    %1387 = vmatprep.subr.mxu0 0.0
    %1388 = vmatpush1.msra.mxu0 %v962
    %1389 = vmatprep.subr.mxu0 0.0
    %1390 = vmatpush1.msra.mxu0 %v961
    %1391 = vmatprep.subr.mxu0 0.0
    %1392 = vmatpush1.msra.mxu0 %v960
    %1393 = vmatprep.subr.mxu0 0.0
    %1394 = vmatpush1.msra.mxu0 %v959
    %1395 = vmatprep.subr.mxu0 0.0
    %1396 = vmatpush1.msra.mxu0 %v958
    %1397 = vmatprep.subr.mxu0 0.0
    %1398 = vmatpush1.msra.mxu0 %v957
    %1399 = vmatprep.subr.mxu0 0.0
    %1400 = vmatpush1.msra.mxu0 %v956
    %1401 = vmatprep.subr.mxu0 0.0
    %1402 = vmatpush1.msra.mxu0 %v955
    %1403 = vmatprep.subr.mxu0 0.0
    %1404 = vmatpush1.msra.mxu0 %v954
    %1405 = vmatprep.subr.mxu0 0.0
    %1406 = vmatpush1.msra.mxu0 %v953
    %1407 = vmatprep.subr.mxu0 0.0
    %1408 = vmatpush1.msra.mxu0 %v952
    %1409 = vmatprep.subr.mxu0 0.0
    %1410 = vmatpush2.msra.mxu0 0.0
    %1411 = vmatprep.subr.mxu0 0.0
    %1412 = vmatpush2.msra.mxu0 0.0
    %1413 = vmatprep.subr.mxu0 0.0
    %1414 = vmatpush2.msra.mxu0 0.0
    %1415 = vmatprep.subr.mxu0 0.0
    %1416 = vmatpush2.msra.mxu0 0.0
    %1417 = vmatprep.subr.mxu0 0.0
    %1418 = vmatpush2.msra.mxu0 0.0
    %1419 = vmatprep.subr.mxu0 0.0
    %1420 = vmatpush2.msra.mxu0 0.0
    %1421 = vmatprep.subr.mxu0 0.0
    %1422 = vmatpush2.msra.mxu0 0.0
    %1423 = vmatprep.subr.mxu0 0.0
    %1424 = vmatpush2.msra.mxu0 0.0
    %1425 = vmatprep.subr.mxu0 0.0
    %1426 = vmatpush2.msra.mxu0 0.0
    %1427 = vmatprep.subr.mxu0 0.0
    %1428 = vmatpush2.msra.mxu0 0.0
    %1429 = vmatprep.subr.mxu0 0.0
    %1430 = vmatpush2.msra.mxu0 0.0
    %1431 = vmatprep.subr.mxu0 0.0
    %1432 = vmatpush2.msra.mxu0 0.0
    %1433 = vmatprep.subr.mxu0 0.0
    %1434 = vmatpush2.msra.mxu0 0.0
    %1435 = vmatprep.subr.mxu0 0.0
    %1436 = vmatpush2.msra.mxu0 0.0
    %1437 = vmatprep.subr.mxu0 0.0
    %1438 = vmatpush2.msra.mxu0 0.0
    %1439 = vmatprep.subr.mxu0 0.0
    %1440 = vmatpush2.msra.mxu0 0.0
    %1441 = vmatprep.mubr.f32.mxu0 0.0
    %1442 = vmatmul.mubr.f32.gmra.mxu0 %v1374
    %v1443 = vpop.f32.mrf.mxu0
    %v1444 = vadd.f32 0.0, %v1443
    %v1445 = vpop.f32.mrf.mxu0
    %1446 = vdwg.mxu0
    %v1447 = vadd.f32 %v1376, %v1444
    %v1448 = vtanh.pop %v1447
    %1449 = vst [vmem:[%s560] sm:$0x3] %v1448
    %v1450 = vld [vmem:[%s635] sm:$0x3]
    %1451 = vmatprep.subr.mxu0 0.0
    %1452 = vmatpush1.msra.mxu0 %v967
    %1453 = vmatprep.subr.mxu0 0.0
    %1454 = vmatpush1.msra.mxu0 %v966
    %1455 = vmatprep.subr.mxu0 0.0
    %1456 = vmatpush1.msra.mxu0 %v965
    %1457 = vmatprep.subr.mxu0 0.0
    %1458 = vmatpush1.msra.mxu0 %v964
    %1459 = vmatprep.subr.mxu0 0.0
    %1460 = vmatpush1.msra.mxu0 %v963
    %1461 = vmatprep.subr.mxu0 0.0
    %1462 = vmatpush1.msra.mxu0 %v962
    %1463 = vmatprep.subr.mxu0 0.0
    %1464 = vmatpush1.msra.mxu0 %v961
    %1465 = vmatprep.subr.mxu0 0.0
    %1466 = vmatpush1.msra.mxu0 %v960
    %1467 = vmatprep.subr.mxu0 0.0
    %1468 = vmatpush1.msra.mxu0 %v959
    %1469 = vmatprep.subr.mxu0 0.0
    %1470 = vmatpush1.msra.mxu0 %v958
    %1471 = vmatprep.subr.mxu0 0.0
    %1472 = vmatpush1.msra.mxu0 %v957
    %1473 = vmatprep.subr.mxu0 0.0
    %1474 = vmatpush1.msra.mxu0 %v956
    %1475 = vmatprep.subr.mxu0 0.0
    %1476 = vmatpush1.msra.mxu0 %v955
    %1477 = vmatprep.subr.mxu0 0.0
    %1478 = vmatpush1.msra.mxu0 %v954
    %1479 = vmatprep.subr.mxu0 0.0
    %1480 = vmatpush1.msra.mxu0 %v953
    %1481 = vmatprep.subr.mxu0 0.0
    %1482 = vmatpush1.msra.mxu0 %v952
    %1483 = vmatprep.subr.mxu0 0.0
    %1484 = vmatpush2.msra.mxu0 0.0
    %1485 = vmatprep.subr.mxu0 0.0
    %1486 = vmatpush2.msra.mxu0 0.0
    %1487 = vmatprep.subr.mxu0 0.0
    %1488 = vmatpush2.msra.mxu0 0.0
    %1489 = vmatprep.subr.mxu0 0.0
    %1490 = vmatpush2.msra.mxu0 0.0
    %1491 = vmatprep.subr.mxu0 0.0
    %1492 = vmatpush2.msra.mxu0 0.0
    %1493 = vmatprep.subr.mxu0 0.0
    %1494 = vmatpush2.msra.mxu0 0.0
    %1495 = vmatprep.subr.mxu0 0.0
    %1496 = vmatpush2.msra.mxu0 0.0
    %1497 = vmatprep.subr.mxu0 0.0
    %1498 = vmatpush2.msra.mxu0 0.0
    %1499 = vmatprep.subr.mxu0 0.0
    %1500 = vmatpush2.msra.mxu0 0.0
    %1501 = vmatprep.subr.mxu0 0.0
    %1502 = vmatpush2.msra.mxu0 0.0
    %1503 = vmatprep.subr.mxu0 0.0
    %1504 = vmatpush2.msra.mxu0 0.0
    %1505 = vmatprep.subr.mxu0 0.0
    %1506 = vmatpush2.msra.mxu0 0.0
    %1507 = vmatprep.subr.mxu0 0.0
    %1508 = vmatpush2.msra.mxu0 0.0
    %1509 = vmatprep.subr.mxu0 0.0
    %1510 = vmatpush2.msra.mxu0 0.0
    %1511 = vmatprep.subr.mxu0 0.0
    %1512 = vmatpush2.msra.mxu0 0.0
    %1513 = vmatprep.subr.mxu0 0.0
    %1514 = vmatpush2.msra.mxu0 0.0
    %1515 = vmatprep.mubr.f32.mxu0 0.0
    %1516 = vmatmul.mubr.f32.gmra.mxu0 %v1448
    %v1517 = vpop.f32.mrf.mxu0
    %v1518 = vadd.f32 0.0, %v1517
    %v1519 = vpop.f32.mrf.mxu0
    %1520 = vdwg.mxu0
    %v1521 = vadd.f32 %v1450, %v1518
    %v1522 = vtanh.pop %v1521
    %1523 = vst [vmem:[%s635] sm:$0x3] %v1522
    %v1524 = vld [vmem:[%s710] sm:$0x3]
    %1525 = vmatprep.subr.mxu0 0.0
    %1526 = vmatpush1.msra.mxu0 %v967
    %1527 = vmatprep.subr.mxu0 0.0
    %1528 = vmatpush1.msra.mxu0 %v966
    %1529 = vmatprep.subr.mxu0 0.0
    %1530 = vmatpush1.msra.mxu0 %v965
    %1531 = vmatprep.subr.mxu0 0.0
    %1532 = vmatpush1.msra.mxu0 %v964
    %1533 = vmatprep.subr.mxu0 0.0
    %1534 = vmatpush1.msra.mxu0 %v963
    %1535 = vmatprep.subr.mxu0 0.0
    %1536 = vmatpush1.msra.mxu0 %v962
    %1537 = vmatprep.subr.mxu0 0.0
    %1538 = vmatpush1.msra.mxu0 %v961
    %1539 = vmatprep.subr.mxu0 0.0
    %1540 = vmatpush1.msra.mxu0 %v960
    %1541 = vmatprep.subr.mxu0 0.0
    %1542 = vmatpush1.msra.mxu0 %v959
    %1543 = vmatprep.subr.mxu0 0.0
    %1544 = vmatpush1.msra.mxu0 %v958
    %1545 = vmatprep.subr.mxu0 0.0
    %1546 = vmatpush1.msra.mxu0 %v957
    %1547 = vmatprep.subr.mxu0 0.0
    %1548 = vmatpush1.msra.mxu0 %v956
    %1549 = vmatprep.subr.mxu0 0.0
    %1550 = vmatpush1.msra.mxu0 %v955
    %1551 = vmatprep.subr.mxu0 0.0
    %1552 = vmatpush1.msra.mxu0 %v954
    %1553 = vmatprep.subr.mxu0 0.0
    %1554 = vmatpush1.msra.mxu0 %v953
    %1555 = vmatprep.subr.mxu0 0.0
    %1556 = vmatpush1.msra.mxu0 %v952
    %1557 = vmatprep.subr.mxu0 0.0
    %1558 = vmatpush2.msra.mxu0 0.0
    %1559 = vmatprep.subr.mxu0 0.0
    %1560 = vmatpush2.msra.mxu0 0.0
    %1561 = vmatprep.subr.mxu0 0.0
    %1562 = vmatpush2.msra.mxu0 0.0
    %1563 = vmatprep.subr.mxu0 0.0
    %1564 = vmatpush2.msra.mxu0 0.0
    %1565 = vmatprep.subr.mxu0 0.0
    %1566 = vmatpush2.msra.mxu0 0.0
    %1567 = vmatprep.subr.mxu0 0.0
    %1568 = vmatpush2.msra.mxu0 0.0
    %1569 = vmatprep.subr.mxu0 0.0
    %1570 = vmatpush2.msra.mxu0 0.0
    %1571 = vmatprep.subr.mxu0 0.0
    %1572 = vmatpush2.msra.mxu0 0.0
    %1573 = vmatprep.subr.mxu0 0.0
    %1574 = vmatpush2.msra.mxu0 0.0
    %1575 = vmatprep.subr.mxu0 0.0
    %1576 = vmatpush2.msra.mxu0 0.0
    %1577 = vmatprep.subr.mxu0 0.0
    %1578 = vmatpush2.msra.mxu0 0.0
    %1579 = vmatprep.subr.mxu0 0.0
    %1580 = vmatpush2.msra.mxu0 0.0
    %1581 = vmatprep.subr.mxu0 0.0
    %1582 = vmatpush2.msra.mxu0 0.0
    %1583 = vmatprep.subr.mxu0 0.0
    %1584 = vmatpush2.msra.mxu0 0.0
    %1585 = vmatprep.subr.mxu0 0.0
    %1586 = vmatpush2.msra.mxu0 0.0
    %1587 = vmatprep.subr.mxu0 0.0
    %1588 = vmatpush2.msra.mxu0 0.0
    %1589 = vmatprep.mubr.f32.mxu0 0.0
    %1590 = vmatmul.mubr.f32.gmra.mxu0 %v1522
    %v1591 = vpop.f32.mrf.mxu0
    %v1592 = vadd.f32 0.0, %v1591
    %v1593 = vpop.f32.mrf.mxu0
    %1594 = vdwg.mxu0
    %v1595 = vadd.f32 %v1524, %v1592
    %v1596 = vtanh.pop %v1595
    %1597 = vst [vmem:[%s710] sm:$0x3] %v1596
    %v1598 = vld [vmem:[%s785] sm:$0x3]
    %1599 = vmatprep.subr.mxu0 0.0
    %1600 = vmatpush1.msra.mxu0 %v967
    %1601 = vmatprep.subr.mxu0 0.0
    %1602 = vmatpush1.msra.mxu0 %v966
    %1603 = vmatprep.subr.mxu0 0.0
    %1604 = vmatpush1.msra.mxu0 %v965
    %1605 = vmatprep.subr.mxu0 0.0
    %1606 = vmatpush1.msra.mxu0 %v964
    %1607 = vmatprep.subr.mxu0 0.0
    %1608 = vmatpush1.msra.mxu0 %v963
    %1609 = vmatprep.subr.mxu0 0.0
    %1610 = vmatpush1.msra.mxu0 %v962
    %1611 = vmatprep.subr.mxu0 0.0
    %1612 = vmatpush1.msra.mxu0 %v961
    %1613 = vmatprep.subr.mxu0 0.0
    %1614 = vmatpush1.msra.mxu0 %v960
    %1615 = vmatprep.subr.mxu0 0.0
    %1616 = vmatpush1.msra.mxu0 %v959
    %1617 = vmatprep.subr.mxu0 0.0
    %1618 = vmatpush1.msra.mxu0 %v958
    %1619 = vmatprep.subr.mxu0 0.0
    %1620 = vmatpush1.msra.mxu0 %v957
    %1621 = vmatprep.subr.mxu0 0.0
    %1622 = vmatpush1.msra.mxu0 %v956
    %1623 = vmatprep.subr.mxu0 0.0
    %1624 = vmatpush1.msra.mxu0 %v955
    %1625 = vmatprep.subr.mxu0 0.0
    %1626 = vmatpush1.msra.mxu0 %v954
    %1627 = vmatprep.subr.mxu0 0.0
    %1628 = vmatpush1.msra.mxu0 %v953
    %1629 = vmatprep.subr.mxu0 0.0
    %1630 = vmatpush1.msra.mxu0 %v952
    %1631 = vmatprep.subr.mxu0 0.0
    %1632 = vmatpush2.msra.mxu0 0.0
    %1633 = vmatprep.subr.mxu0 0.0
    %1634 = vmatpush2.msra.mxu0 0.0
    %1635 = vmatprep.subr.mxu0 0.0
    %1636 = vmatpush2.msra.mxu0 0.0
    %1637 = vmatprep.subr.mxu0 0.0
    %1638 = vmatpush2.msra.mxu0 0.0
    %1639 = vmatprep.subr.mxu0 0.0
    %1640 = vmatpush2.msra.mxu0 0.0
    %1641 = vmatprep.subr.mxu0 0.0
    %1642 = vmatpush2.msra.mxu0 0.0
    %1643 = vmatprep.subr.mxu0 0.0
    %1644 = vmatpush2.msra.mxu0 0.0
    %1645 = vmatprep.subr.mxu0 0.0
    %1646 = vmatpush2.msra.mxu0 0.0
    %1647 = vmatprep.subr.mxu0 0.0
    %1648 = vmatpush2.msra.mxu0 0.0
    %1649 = vmatprep.subr.mxu0 0.0
    %1650 = vmatpush2.msra.mxu0 0.0
    %1651 = vmatprep.subr.mxu0 0.0
    %1652 = vmatpush2.msra.mxu0 0.0
    %1653 = vmatprep.subr.mxu0 0.0
    %1654 = vmatpush2.msra.mxu0 0.0
    %1655 = vmatprep.subr.mxu0 0.0
    %1656 = vmatpush2.msra.mxu0 0.0
    %1657 = vmatprep.subr.mxu0 0.0
    %1658 = vmatpush2.msra.mxu0 0.0
    %1659 = vmatprep.subr.mxu0 0.0
    %1660 = vmatpush2.msra.mxu0 0.0
    %1661 = vmatprep.subr.mxu0 0.0
    %1662 = vmatpush2.msra.mxu0 0.0
    %1663 = vmatprep.mubr.f32.mxu0 0.0
    %1664 = vmatmul.mubr.f32.gmra.mxu0 %v1596
    %v1665 = vpop.f32.mrf.mxu0
    %v1666 = vadd.f32 0.0, %v1665
    %v1667 = vpop.f32.mrf.mxu0
    %1668 = vdwg.mxu0
    %v1669 = vadd.f32 %v1598, %v1666
    %v1670 = vtanh.pop %v1669
    %1671 = vst [vmem:[%s785] sm:$0x3] %v1670
    %v1672 = vld [vmem:[%s860] sm:$0x3]
    %1673 = vmatprep.subr.mxu0 0.0
    %1674 = vmatpush1.msra.mxu0 %v967
    %1675 = vmatprep.subr.mxu0 0.0
    %1676 = vmatpush1.msra.mxu0 %v966
    %1677 = vmatprep.subr.mxu0 0.0
    %1678 = vmatpush1.msra.mxu0 %v965
    %1679 = vmatprep.subr.mxu0 0.0
    %1680 = vmatpush1.msra.mxu0 %v964
    %1681 = vmatprep.subr.mxu0 0.0
    %1682 = vmatpush1.msra.mxu0 %v963
    %1683 = vmatprep.subr.mxu0 0.0
    %1684 = vmatpush1.msra.mxu0 %v962
    %1685 = vmatprep.subr.mxu0 0.0
    %1686 = vmatpush1.msra.mxu0 %v961
    %1687 = vmatprep.subr.mxu0 0.0
    %1688 = vmatpush1.msra.mxu0 %v960
    %1689 = vmatprep.subr.mxu0 0.0
    %1690 = vmatpush1.msra.mxu0 %v959
    %1691 = vmatprep.subr.mxu0 0.0
    %1692 = vmatpush1.msra.mxu0 %v958
    %1693 = vmatprep.subr.mxu0 0.0
    %1694 = vmatpush1.msra.mxu0 %v957
    %1695 = vmatprep.subr.mxu0 0.0
    %1696 = vmatpush1.msra.mxu0 %v956
    %1697 = vmatprep.subr.mxu0 0.0
    %1698 = vmatpush1.msra.mxu0 %v955
    %1699 = vmatprep.subr.mxu0 0.0
    %1700 = vmatpush1.msra.mxu0 %v954
    %1701 = vmatprep.subr.mxu0 0.0
    %1702 = vmatpush1.msra.mxu0 %v953
    %1703 = vmatprep.subr.mxu0 0.0
    %1704 = vmatpush1.msra.mxu0 %v952
    %1705 = vmatprep.subr.mxu0 0.0
    %1706 = vmatpush2.msra.mxu0 0.0
    %1707 = vmatprep.subr.mxu0 0.0
    %1708 = vmatpush2.msra.mxu0 0.0
    %1709 = vmatprep.subr.mxu0 0.0
    %1710 = vmatpush2.msra.mxu0 0.0
    %1711 = vmatprep.subr.mxu0 0.0
    %1712 = vmatpush2.msra.mxu0 0.0
    %1713 = vmatprep.subr.mxu0 0.0
    %1714 = vmatpush2.msra.mxu0 0.0
    %1715 = vmatprep.subr.mxu0 0.0
    %1716 = vmatpush2.msra.mxu0 0.0
    %1717 = vmatprep.subr.mxu0 0.0
    %1718 = vmatpush2.msra.mxu0 0.0
    %1719 = vmatprep.subr.mxu0 0.0
    %1720 = vmatpush2.msra.mxu0 0.0
    %1721 = vmatprep.subr.mxu0 0.0
    %1722 = vmatpush2.msra.mxu0 0.0
    %1723 = vmatprep.subr.mxu0 0.0
    %1724 = vmatpush2.msra.mxu0 0.0
    %1725 = vmatprep.subr.mxu0 0.0
    %1726 = vmatpush2.msra.mxu0 0.0
    %1727 = vmatprep.subr.mxu0 0.0
    %1728 = vmatpush2.msra.mxu0 0.0
    %1729 = vmatprep.subr.mxu0 0.0
    %1730 = vmatpush2.msra.mxu0 0.0
    %1731 = vmatprep.subr.mxu0 0.0
    %1732 = vmatpush2.msra.mxu0 0.0
    %1733 = vmatprep.subr.mxu0 0.0
    %1734 = vmatpush2.msra.mxu0 0.0
    %1735 = vmatprep.subr.mxu0 0.0
    %1736 = vmatpush2.msra.mxu0 0.0
    %1737 = vmatprep.mubr.f32.mxu0 0.0
    %1738 = vmatmul.mubr.f32.gmra.mxu0 %v1670
    %v1739 = vpop.f32.mrf.mxu0
    %v1740 = vadd.f32 0.0, %v1739
    %v1741 = vpop.f32.mrf.mxu0
    %1742 = vdwg.mxu0
    %v1743 = vadd.f32 %v1672, %v1740
    %v1744 = vtanh.pop %v1743
    %1745 = vst [vmem:[%s860] sm:$0x3] %v1744
    %s1746 = scalar_lea.vmem [#allocation15], 2
    %1747 = vst [vmem:[%s1746] sm:$0x3] %v1744
    %v1748 = vld [vmem:[#allocation2] sm:$0x3]
    %v1749 = vld [vmem:[#allocation2 + $0x2] sm:$0x3]
    %v1750 = vld [vmem:[#allocation2 + $0x4] sm:$0x3]
    %v1751 = vld [vmem:[#allocation2 + $0x6] sm:$0x3]
    %v1752 = vld [vmem:[#allocation2 + $0x8] sm:$0x3]
    %v1753 = vld [vmem:[#allocation2 + $0xa] sm:$0x3]
    %v1754 = vld [vmem:[#allocation2 + $0xc] sm:$0x3]
    %v1755 = vld [vmem:[#allocation2 + $0xe] sm:$0x3]
    %v1756 = vld [vmem:[#allocation12] sm:$0xff]
    %v1757 = vld [vmem:[#allocation12 + $0x8] sm:$0xff]
    %v1758 = vld [vmem:[#allocation12 + $0x10] sm:$0xff]
    %v1759 = vld [vmem:[#allocation12 + $0x18] sm:$0xff]
    %v1760 = vld [vmem:[#allocation12 + $0x20] sm:$0xff]
    %v1761 = vld [vmem:[#allocation12 + $0x28] sm:$0xff]
    %v1762 = vld [vmem:[#allocation12 + $0x30] sm:$0xff]
    %v1763 = vld [vmem:[#allocation12 + $0x38] sm:$0xff]
    %v1764 = vld [vmem:[#allocation12 + $0x40] sm:$0xff]
    %v1765 = vld [vmem:[#allocation12 + $0x48] sm:$0xff]
    %v1766 = vld [vmem:[#allocation12 + $0x50] sm:$0xff]
    %v1767 = vld [vmem:[#allocation12 + $0x58] sm:$0xff]
    %v1768 = vld [vmem:[#allocation12 + $0x60] sm:$0xff]
    %v1769 = vld [vmem:[#allocation12 + $0x68] sm:$0xff]
    %v1770 = vld [vmem:[#allocation12 + $0x70] sm:$0xff]
    %v1771 = vld [vmem:[#allocation12 + $0x78] sm:$0xff]
    %v1772 = vld [vmem:[%s8] sm:$0x1]
    %v1774 = vlaneseq
    %v1775 = vshrl.u32 %v1774, 7
    %v1776 = vsub.s32 0, %v1775
    %v1777 = vrot.slane %v1772, %v1776
    %v1787 = vcombine.low %v1748, %v1749
    %v1788 = vcombine.low %v1750, %v1751
    %v1790 = vunpack.c.l.s4 1983009808
    %v1791 = vunpack.c.0.s8 %v1790
    %v1792 = vlaneseq
    %v1793 = vshrl.u32 %v1792, 7
    %v1794 = vsub.s32 %v1791, %v1793
    %v1795 = vrot.slane %v1787, %v1794
    %v1797 = vunpack.c.l.s4 1983009808
    %v1798 = vunpack.c.0.s8 %v1797
    %v1799 = vlaneseq
    %v1800 = vshrl.u32 %v1799, 7
    %v1801 = vsub.s32 %v1798, %v1800
    %v1802 = vrot.slane %v1788, %v1801
    %v1803 = vcombine.low %v1795, %v1802
    %v1804 = vcombine.low %v1752, %v1753
    %v1805 = vcombine.low %v1754, %v1755
    %v1807 = vunpack.c.l.s4 1983009808
    %v1808 = vunpack.c.0.s8 %v1807
    %v1809 = vlaneseq
    %v1810 = vshrl.u32 %v1809, 7
    %v1811 = vsub.s32 %v1808, %v1810
    %v1812 = vrot.slane %v1804, %v1811
    %v1814 = vunpack.c.l.s4 1983009808
    %v1815 = vunpack.c.0.s8 %v1814
    %v1816 = vlaneseq
    %v1817 = vshrl.u32 %v1816, 7
    %v1818 = vsub.s32 %v1815, %v1817
    %v1819 = vrot.slane %v1805, %v1818
    %v1820 = vcombine.low %v1812, %v1819
    %1823 = vmatprep.subr.mxu0 0.0
    %1824 = vmatpush1.msra.mxu0 %v1771
    %1825 = vmatprep.subr.mxu0 0.0
    %1826 = vmatpush1.msra.mxu0 %v1770
    %1827 = vmatprep.subr.mxu0 0.0
    %1828 = vmatpush1.msra.mxu0 %v1769
    %1829 = vmatprep.subr.mxu0 0.0
    %1830 = vmatpush1.msra.mxu0 %v1768
    %1831 = vmatprep.subr.mxu0 0.0
    %1832 = vmatpush1.msra.mxu0 %v1767
    %1833 = vmatprep.subr.mxu0 0.0
    %1834 = vmatpush1.msra.mxu0 %v1766
    %1835 = vmatprep.subr.mxu0 0.0
    %1836 = vmatpush1.msra.mxu0 %v1765
    %1837 = vmatprep.subr.mxu0 0.0
    %1838 = vmatpush1.msra.mxu0 %v1764
    %1839 = vmatprep.subr.mxu0 0.0
    %1840 = vmatpush1.msra.mxu0 %v1763
    %1841 = vmatprep.subr.mxu0 0.0
    %1842 = vmatpush1.msra.mxu0 %v1762
    %1843 = vmatprep.subr.mxu0 0.0
    %1844 = vmatpush1.msra.mxu0 %v1761
    %1845 = vmatprep.subr.mxu0 0.0
    %1846 = vmatpush1.msra.mxu0 %v1760
    %1847 = vmatprep.subr.mxu0 0.0
    %1848 = vmatpush1.msra.mxu0 %v1759
    %1849 = vmatprep.subr.mxu0 0.0
    %1850 = vmatpush1.msra.mxu0 %v1758
    %1851 = vmatprep.subr.mxu0 0.0
    %1852 = vmatpush1.msra.mxu0 %v1757
    %1853 = vmatprep.subr.mxu0 0.0
    %1854 = vmatpush1.msra.mxu0 %v1756
    %1855 = vmatprep.subr.mxu0 0.0
    %1856 = vmatpush2.msra.mxu0 0.0
    %1857 = vmatprep.subr.mxu0 0.0
    %1858 = vmatpush2.msra.mxu0 0.0
    %1859 = vmatprep.subr.mxu0 0.0
    %1860 = vmatpush2.msra.mxu0 0.0
    %1861 = vmatprep.subr.mxu0 0.0
    %1862 = vmatpush2.msra.mxu0 0.0
    %1863 = vmatprep.subr.mxu0 0.0
    %1864 = vmatpush2.msra.mxu0 0.0
    %1865 = vmatprep.subr.mxu0 0.0
    %1866 = vmatpush2.msra.mxu0 0.0
    %1867 = vmatprep.subr.mxu0 0.0
    %1868 = vmatpush2.msra.mxu0 0.0
    %1869 = vmatprep.subr.mxu0 0.0
    %1870 = vmatpush2.msra.mxu0 0.0
    %1871 = vmatprep.subr.mxu0 0.0
    %1872 = vmatpush2.msra.mxu0 0.0
    %1873 = vmatprep.subr.mxu0 0.0
    %1874 = vmatpush2.msra.mxu0 0.0
    %1875 = vmatprep.subr.mxu0 0.0
    %1876 = vmatpush2.msra.mxu0 0.0
    %1877 = vmatprep.subr.mxu0 0.0
    %1878 = vmatpush2.msra.mxu0 0.0
    %1879 = vmatprep.subr.mxu0 0.0
    %1880 = vmatpush2.msra.mxu0 0.0
    %1881 = vmatprep.subr.mxu0 0.0
    %1882 = vmatpush2.msra.mxu0 0.0
    %1883 = vmatprep.subr.mxu0 0.0
    %1884 = vmatpush2.msra.mxu0 0.0
    %1885 = vmatprep.subr.mxu0 0.0
    %1886 = vmatpush2.msra.mxu0 0.0
    %1887 = vmatprep.mubr.f32.mxu0 0.0
    %1888 = vmatmul.mubr.f32.gmra.mxu0 %v1803
    %v1889 = vpop.f32.mrf.mxu0
    %v1890 = vadd.f32 %v1777, %v1889
    %v1891 = vpop.f32.mrf.mxu0
    %1892 = vmatprep.mubr.f32.mxu0 0.0
    %1893 = vmatmul.mubr.f32.gmra.mxu0 %v1820
    %v1894 = vpop.f32.mrf.mxu0
    %v1895 = vadd.f32 %v1777, %v1894
    %v1896 = vpop.f32.mrf.mxu0
    %1897 = vdwg.mxu0
    %v1900 = vcombine.high %v1890, %v1890
    %v1902 = vunpack.c.l.s4 1983009808
    %v1903 = vunpack.c.0.s8 %v1902
    %v1904 = vlaneseq
    %v1905 = vshrl.u32 %v1904, 7
    %v1906 = vsub.s32 %v1903, %v1905
    %v1907 = vrot.slane %v1890, %v1906
    %v1909 = vunpack.c.l.s4 1983009808
    %v1910 = vunpack.c.0.s8 %v1909
    %v1911 = vlaneseq
    %v1912 = vshrl.u32 %v1911, 7
    %v1913 = vsub.s32 %v1910, %v1912
    %v1914 = vrot.slane %v1900, %v1913
    %v1915 = vcombine.high %v1907, %v1907
    %v1916 = vcombine.high %v1914, %v1914
    %v1917 = vcombine.high %v1895, %v1895
    %v1919 = vunpack.c.l.s4 1983009808
    %v1920 = vunpack.c.0.s8 %v1919
    %v1921 = vlaneseq
    %v1922 = vshrl.u32 %v1921, 7
    %v1923 = vsub.s32 %v1920, %v1922
    %v1924 = vrot.slane %v1895, %v1923
    %v1926 = vunpack.c.l.s4 1983009808
    %v1927 = vunpack.c.0.s8 %v1926
    %v1928 = vlaneseq
    %v1929 = vshrl.u32 %v1928, 7
    %v1930 = vsub.s32 %v1927, %v1929
    %v1931 = vrot.slane %v1917, %v1930
    %v1932 = vcombine.high %v1924, %v1924
    %v1933 = vcombine.high %v1931, %v1931
    %1942 = vst [vmem:[#allocation14] sm:$0x3] %v1907
    %1943 = vst [vmem:[#allocation14 + $0x2] sm:$0x3] %v1915
    %1944 = vst [vmem:[#allocation14 + $0x4] sm:$0x3] %v1914
    %1945 = vst [vmem:[#allocation14 + $0x6] sm:$0x3] %v1916
    %1946 = vst [vmem:[#allocation14 + $0x8] sm:$0x3] %v1924
    %1947 = vst [vmem:[#allocation14 + $0xa] sm:$0x3] %v1932
    %1948 = vst [vmem:[#allocation14 + $0xc] sm:$0x3] %v1931
    %1949 = vst [vmem:[#allocation14 + $0xe] sm:$0x3] %v1933
    // Predicated region
    $region62: #{tpu_custom_call.1} parent=1 // pred_check
      _
    $region63: #{tpu_custom_call.1} parent=1 // pred_check_branch
      %1951 = sbr.rel (0) target = $region65
    $region64: #{tpu_custom_call.1} parent=1 // pred_region
      %s1953 = ssub.s32 256, 256
      %1954 = vsyncadd [#allocation5], %s1953
      %s1955 = sshll.u32 [#allocation14], 4
      %s1956 = int_to_ptr.vmem [resolvable:$true] %s1955
      %1961 = dma.vmem_to_hbm [thread:$0]  %s1956, 256, %s9, [#allocation5], 32, 32, 2
    $region65: #{tpu_custom_call.1} parent=1 // pred_fallthru
      _
    // Predicated region
    $region66: #{tpu_custom_call.1} parent=1 // pred_check
      _
    $region67: #{tpu_custom_call.1} parent=1 // pred_check_branch
      %1963 = sbr.rel (0) target = $region69
    $region68: #{tpu_custom_call.1} parent=1 // pred_region
      %s1965 = ssub.s32 64, 64
      %1966 = vsyncadd [#allocation16], %s1965
      %s1967 = sshll.u32 [#allocation15], 4
      %s1968 = int_to_ptr.vmem [resolvable:$true] %s1967
      %1973 = dma.vmem_to_hbm [thread:$0]  %s1968, 64, %s10, [#allocation16], 32, 32, 2
    $region69: #{tpu_custom_call.1} parent=1 // pred_fallthru
      _
    // Predicated region
    $region70: #{tpu_custom_call.1} parent=1 // pred_check
      _
    $region71: #{tpu_custom_call.1} parent=1 // pred_check_branch
      %1975 = sbr.rel (0) target = $region73
    $region72: #{tpu_custom_call.1} parent=1 // pred_region
      %1976 = dma.done [#allocation5], 256
    $region73: #{tpu_custom_call.1} parent=1 // pred_fallthru
      _
    // Predicated region
    $region74: #{tpu_custom_call.1} parent=1 // pred_check
      _
    $region75: #{tpu_custom_call.1} parent=1 // pred_check_branch
      %1978 = sbr.rel (0) target = $region77
    $region76: #{tpu_custom_call.1} parent=1 // pred_region
      %1979 = dma.done [#allocation16], 64
    $region77: #{tpu_custom_call.1} parent=1 // pred_fallthru
      _
    %1980 = vsyncpa [#allocation4], 1
    %1981 = vsyncpa [#allocation7], 1
    %1982 = vsyncpa [#allocation10], 1
    %1983 = vsyncpa [#allocation13], 1
    %1984 = vsyncpa [#allocation5], 1
    %1985 = vsyncpa [#allocation16], 1

</llo_original>
